<compile_context>
chip_gen: v6e
topology: v6e:2x2x1
jax: 0.10.0
libtpu: 0.0.40
codegen_flags: <defaults>
</compile_context>

<pallas_src>
import math
import functools

import jax
import jax.numpy as jnp
from jax.experimental import pallas as pl
from jax.experimental.pallas import tpu as pltpu


# ----------------------------- Pallas kernel --------------------------------

def _kpconv_kernel(nbT_ref, nbxT_ref, kp_ref, w_ref, o_ref, *,
                   kp_extent, mxu_bf16):
    """One tile of query points; the query index q is the minor (lane) axis.

    nbT_ref  : [P, H, tq]     centered neighbor coords (s_pt - q_pt)
    nbxT_ref : [Cin, H, tq]   gathered (zero-padded) neighbor features
    kp_ref   : [P, K, 1]      kernel point coordinates
    w_ref    : [Cout, Cin*K]  conv weights, w_ref[o, c*K + k] = W[k, c, o]
    o_ref    : [Cout, tq]     output features (lane-dense stores)
    """
    P, H, tq = nbT_ref.shape
    Cin = nbxT_ref.shape[0]
    K = kp_ref.shape[1]
    inv_ext = 1.0 / kp_extent

    # Kernel-point coords broadcast along lanes ONCE per tile (hoisted out of
    # the unrolled loops; JAX does not CSE broadcast_in_dim).
    # TODO(synk): an SMEM copy of the 48 kp scalars + full k-unroll would avoid
    # these lane splats entirely, at the cost of a ~K*H-times larger kernel body.
    kpb = jnp.broadcast_to(kp_ref[...], (P, K, tq))          # [P, K, tq]

    # wf[c][k, q] = sum_h aw[h, k, q] * nbx[h, c, q]   (aggregation_mode='sum')
    wf = [jnp.zeros((K, tq), jnp.float32) for _ in range(Cin)]

    for h in range(H):                       # static unroll, H = 8
        # Exact squared distance of neighbor h to every kernel point, unrolled
        # over P: live set is one [K, tq] accumulator + one [K, tq] diff
        # (no [P, H, K, tq] intermediate).
        sq = jnp.zeros((K, tq), jnp.float32)
        for p in range(P):                   # static unroll, P = 3
            nb_row = nbT_ref[p, h:h + 1, :]  # [1, tq]
            d = nb_row - kpb[p]              # [K, tq]
            sq = sq + d * d
        # Linear kernel-point influence, clamped at 0 (KP_influence='linear').
        aw = jnp.maximum(1.0 - jnp.sqrt(sq) * inv_ext, 0.0)   # [K, tq]

        # H-contraction as an unrolled accumulation (no [H, K, Cin, tq] temp);
        # all VPU work stays f32 (v5e has no bf16 VPU path).
        for c in range(Cin):                 # static unroll, Cin = 8
            x_row = nbxT_ref[c, h:h + 1, :]  # [1, tq]
            wf[c] = wf[c] + aw * x_row

    # Single deep matmul over (c, k): contraction depth Cin*K (=128 here).
    wf2 = jnp.concatenate(wf, axis=0)        # [Cin*K, tq], row index = c*K + k
    if mxu_bf16:
        # bf16 operands, f32 accumulate: one MXU pass instead of a decomposed
        # f32 matmul; w_ref already arrives as bf16 from the wrapper.
        wf2 = wf2.astype(jnp.bfloat16)
    o_ref[...] = jnp.dot(w_ref[...], wf2, preferred_element_type=jnp.float32)


# ------------------------------ wrapper --------------------------------------

def _round_up(a, b):
    return -(-a // b) * b


def conv_op_forward(q_pts, s_pts, neighb_inds, x, kernel_points, weights,
                    kp_extent, *, tq=256, mxu_bf16=True, transposed_output=False):
    Nq, P = q_pts.shape
    Ns = s_pts.shape[0]
    H = neighb_inds.shape[1]
    K, Cin, Cout = weights.shape

    # --- tile size (q is the lane axis inside the kernel) --------------------
    n_lane_tiles = _round_up(Nq, 128) // 128
    tq = max(128, (int(tq) // 128) * 128)            # multiple of 128 lanes
    # v7x has 2 TensorCores per chip: keep the parallel grid >= ~8 steps when
    # the problem allows so both cores get work; never tile past the problem.
    tq = min(tq, max(128, (n_lane_tiles // 8) * 128), n_lane_tiles * 128)
    Nq_pad = _round_up(Nq, tq)

    # --- glue: shadow padding + neighbor gather, DIRECTLY in kernel layout ---
    # The gather now produces [P, H, Nq] / [Cin, H, Nq] (query on the minor
    # axis), so no [Nq, H, *] intermediates and no large XLA transposes remain.
    # TODO(synk): a fully in-kernel gather (scalar-prefetch neighb_inds + VMEM
    # resident s_pts/x) would also remove the gathered arrays' HBM round trip.
    inds_pad = jnp.pad(neighb_inds, ((0, Nq_pad - Nq), (0, 0)),
                       constant_values=Ns)                        # pads -> shadow
    indsT = inds_pad.T                                            # [H, Nq_pad]
    s_padT = jnp.concatenate(
        [s_pts.T, jnp.full((P, 1), 1e6, s_pts.dtype)], axis=1)    # [P, Ns+1]
    x_padT = jnp.concatenate(
        [x.T, jnp.zeros((Cin, 1), x.dtype)], axis=1)              # [Cin, Ns+1]
    q_padT = jnp.pad(q_pts.T, ((0, 0), (0, Nq_pad - Nq)))         # [P, Nq_pad]

    nbT = (jnp.take(s_padT, indsT, axis=1)
           - q_padT[:, None, :]).astype(jnp.float32)              # [P, H, Nq_pad]
    nbxT = jnp.take(x_padT, indsT, axis=1).astype(jnp.float32)    # [Cin, H, Nq_pad]
    # TODO(synk): on v6e/v7x nbT/nbxT could be carried as bf16 in HBM (cast on
    # load inside the kernel) to halve the dominant DMA stream; kept f32 here.

    kp = kernel_points.T[:, :, None].astype(jnp.float32)          # [P, K, 1]
    w2 = jnp.transpose(weights, (2, 1, 0)).reshape(Cout, Cin * K) # w2[o, c*K+k]
    w2 = w2.astype(jnp.bfloat16 if mxu_bf16 else jnp.float32)

    kernel = functools.partial(_kpconv_kernel, kp_extent=float(kp_extent),
                               mxu_bf16=mxu_bf16)

    outT = pl.pallas_call(
        kernel,
        out_shape=jax.ShapeDtypeStruct((Cout, Nq_pad), jnp.float32),
        grid_spec=pltpu.PrefetchScalarGridSpec(
            num_scalar_prefetch=0,
            grid=(Nq_pad // tq,),
            in_specs=[
                pl.BlockSpec((P, H, tq),       lambda i: (0, 0, i)),
                pl.BlockSpec((Cin, H, tq),     lambda i: (0, 0, i)),
                pl.BlockSpec((P, K, 1),        lambda i: (0, 0, 0)),
                pl.BlockSpec((Cout, Cin * K),  lambda i: (0, 0)),
            ],
            out_specs=pl.BlockSpec((Cout, tq), lambda i: (0, i)),
        ),
        compiler_params=pltpu.CompilerParams(
            dimension_semantics=("parallel",)),
    )(nbT, nbxT, kp, w2)

    if transposed_output:
        return outT[:, :Nq]          # [Cout, Nq] lane-dense; fuse into consumer
    return outT[:, :Nq].T            # [Nq, Cout]


# --------------------------- pure-JAX reference -------------------------------
# mirrors the PyTorch forward literally (for a correctness check)

def conv_op_reference(q_pts, s_pts, neighb_inds, x, kernel_points, weights, kp_extent):
    P = s_pts.shape[1]
    Cin = x.shape[1]
    s_pad = jnp.concatenate([s_pts, jnp.full((1, P), 1e6, s_pts.dtype)], 0)
    neighbors = s_pad[neighb_inds] - q_pts[:, None, :]                  # [Nq,H,P]
    diff = neighbors[:, :, None, :] - kernel_points[None, None, :, :]   # [Nq,H,K,P]
    sq = jnp.sum(diff ** 2, axis=3)                                     # [Nq,H,K]
    aw = jnp.clip(1.0 - jnp.sqrt(sq) / kp_extent, 0.0, None)
    aw = jnp.transpose(aw, (0, 2, 1))                                   # [Nq,K,H]
    x_pad = jnp.concatenate([x, jnp.zeros((1, Cin), x.dtype)], 0)
    nbx = x_pad[neighb_inds]                                            # [Nq,H,Cin]
    wf = jnp.matmul(aw, nbx)                                            # [Nq,K,Cin]
    wf = jnp.transpose(wf, (1, 0, 2))                                   # [K,Nq,Cin]
    ko = jnp.matmul(wf, weights)                                        # [K,Nq,Cout]
    return jnp.sum(ko, axis=0)                                          # [Nq,Cout]


# ------------------------------ parameter init -------------------------------

def init_params(key, K, p_dim, in_channels, out_channels, radius):
    kw, kd, kr = jax.random.split(key, 3)
    # kaiming_uniform_(a=sqrt(5)) on a [K, Cin, Cout] tensor:
    # fan_in = Cin * Cout, bound = 1/sqrt(fan_in)
    bound = 1.0 / math.sqrt(in_channels * out_channels)
    weights = jax.random.uniform(kw, (K, in_channels, out_channels),
                                 jnp.float32, -bound, bound)
    # TODO(synk): load_kernels() (optimized kernel-point dispositions) replaced by
    # deterministic uniform-in-sphere sampling with the center point fixed ('center').
    dirs = jax.random.normal(kd, (K, p_dim), jnp.float32)
    dirs = dirs / (jnp.linalg.norm(dirs, axis=1, keepdims=True) + 1e-9)
    radii = radius * jax.random.uniform(kr, (K, 1), jnp.float32) ** (1.0 / p_dim)
    kernel_points = dirs * radii
    kernel_points = kernel_points.at[0].set(jnp.zeros((p_dim,), jnp.float32))
    return weights, kernel_points


# ---------------------------------- main --------------------------------------

if __name__ == "__main__":
    key = jax.random.PRNGKey(0)
    k1, k2, k3, k4, kparam = jax.random.split(key, 5)

    # module config
    K = 16            # kernel points
    p_dim = 3
    Cin = 8
    Cout = 16
    radius = 2.5
    KP_extent = 1.2

    # small problem sizes (multi-step grid + query padding exercised)
    Nq = 300          # query points
    Ns = 250          # support points
    H = 8             # neighbors per query

    q_pts = jax.random.uniform(k1, (Nq, p_dim), jnp.float32, 0.0, radius)
    s_pts = jax.random.uniform(k2, (Ns, p_dim), jnp.float32, 0.0, radius)
    x = jax.random.normal(k3, (Ns, Cin), jnp.float32)
    # indices in [0, Ns]; value Ns selects the shadow (padding) neighbor
    neighb_inds = jax.random.randint(k4, (Nq, H), 0, Ns + 1, dtype=jnp.int32)

    weights, kernel_points = init_params(kparam, K, p_dim, Cin, Cout, radius)

    ref = conv_op_reference(q_pts, s_pts, neighb_inds, x,
                            kernel_points, weights, KP_extent)
    ref = jax.block_until_ready(ref)

    # exact path (f32 MXU operands): tight correctness check
    out_f32 = conv_op_forward(q_pts, s_pts, neighb_inds, x,
                              kernel_points, weights, KP_extent,
                              tq=256, mxu_bf16=False)
    out_f32 = jax.block_until_ready(out_f32)
    assert out_f32.shape == (Nq, Cout)
    assert jnp.allclose(out_f32, ref, rtol=1e-3, atol=1e-3), \
        f"f32 max abs err {jnp.max(jnp.abs(out_f32 - ref))}"

    # default fast path (bf16 MXU operands, f32 accumulate): looser tolerance
    out = conv_op_forward(q_pts, s_pts, neighb_inds, x,
                          kernel_points, weights, KP_extent)
    out = jax.block_until_ready(out)
    assert out.shape == (Nq, Cout)
    assert jnp.allclose(out, ref, rtol=3e-2, atol=3e-2), \
        f"bf16 max abs err {jnp.max(jnp.abs(out - ref))}"

    print("KERNEL_OK")
</pallas_src>

<mosaic_0001>
module attributes {stable_mosaic.version = 11 : i64} {
  func.func @_kpconv_kernel(%arg0: i32, %arg1: memref<3x8x128xf32, #tpu.memory_space<vmem>>, %arg2: memref<8x8x128xf32, #tpu.memory_space<vmem>>, %arg3: memref<3x16x1xf32, #tpu.memory_space<vmem>>, %arg4: memref<16x128xf32, #tpu.memory_space<vmem>>, %arg5: memref<16x128xf32, #tpu.memory_space<vmem>>) attributes {dimension_semantics = [#tpu.dimension_semantics<parallel>], iteration_bounds = array<i64: 3>, scalar_prefetch = 0 : i64, scratch_operands = 0 : i64, tpu.core_type = #tpu.core_type<tc>, window_params = [{transform_indices = @transform_0, window_bounds = array<i64: 3, 8, 128>}, {transform_indices = @transform_1, window_bounds = array<i64: 8, 8, 128>}, {pipeline_mode = #tpu.pipeline_mode<synchronous>, transform_indices = @transform_2, window_bounds = array<i64: 3, 16, 1>}, {pipeline_mode = #tpu.pipeline_mode<synchronous>, transform_indices = @transform_3, window_bounds = array<i64: 16, 128>}, {transform_indices = @transform_4, window_bounds = array<i64: 16, 128>}]} {
    %c0 = arith.constant 0 : index
    %c0_0 = arith.constant 0 : index
    %c0_1 = arith.constant 0 : index
    %0 = vector.load %arg3[%c0, %c0_0, %c0_1] : memref<3x16x1xf32, #tpu.memory_space<vmem>>, vector<3x16x1xf32>
    %1 = vector.shape_cast %0 : vector<3x16x1xf32> to vector<3x16x1xf32>
    %2 = vector.broadcast %1 : vector<3x16x1xf32> to vector<3x16x128xf32>
    %cst = arith.constant 0.000000e+00 : f32
    %3 = vector.broadcast %cst : f32 to vector<16x128xf32>
    %cst_2 = arith.constant 0.000000e+00 : f32
    %4 = vector.broadcast %cst_2 : f32 to vector<16x128xf32>
    %cst_3 = arith.constant 0.000000e+00 : f32
    %5 = vector.broadcast %cst_3 : f32 to vector<16x128xf32>
    %cst_4 = arith.constant 0.000000e+00 : f32
    %6 = vector.broadcast %cst_4 : f32 to vector<16x128xf32>
    %cst_5 = arith.constant 0.000000e+00 : f32
    %7 = vector.broadcast %cst_5 : f32 to vector<16x128xf32>
    %cst_6 = arith.constant 0.000000e+00 : f32
    %8 = vector.broadcast %cst_6 : f32 to vector<16x128xf32>
    %cst_7 = arith.constant 0.000000e+00 : f32
    %9 = vector.broadcast %cst_7 : f32 to vector<16x128xf32>
    %cst_8 = arith.constant 0.000000e+00 : f32
    %10 = vector.broadcast %cst_8 : f32 to vector<16x128xf32>
    %cst_9 = arith.constant 0.000000e+00 : f32
    %11 = vector.broadcast %cst_9 : f32 to vector<16x128xf32>
    %c0_10 = arith.constant 0 : index
    %c0_11 = arith.constant 0 : index
    %c0_12 = arith.constant 0 : index
    %12 = vector.load %arg1[%c0_10, %c0_11, %c0_12] : memref<3x8x128xf32, #tpu.memory_space<vmem>>, vector<1x1x128xf32>
    %13 = vector.shape_cast %12 : vector<1x1x128xf32> to vector<1x128xf32>
    %14 = vector.extract_strided_slice %2 {offsets = [0, 0, 0], sizes = [1, 16, 128], strides = [1, 1, 1]} : vector<3x16x128xf32> to vector<1x16x128xf32>
    %15 = vector.shape_cast %14 : vector<1x16x128xf32> to vector<16x128xf32>
    %16 = vector.broadcast %13 : vector<1x128xf32> to vector<16x128xf32>
    %17 = arith.subf %16, %15 : vector<16x128xf32>
    %18 = arith.mulf %17, %17 : vector<16x128xf32>
    %19 = arith.addf %11, %18 : vector<16x128xf32>
    %c1 = arith.constant 1 : index
    %c0_13 = arith.constant 0 : index
    %c0_14 = arith.constant 0 : index
    %20 = vector.load %arg1[%c1, %c0_13, %c0_14] : memref<3x8x128xf32, #tpu.memory_space<vmem>>, vector<1x1x128xf32>
    %21 = vector.shape_cast %20 : vector<1x1x128xf32> to vector<1x128xf32>
    %22 = vector.extract_strided_slice %2 {offsets = [1, 0, 0], sizes = [1, 16, 128], strides = [1, 1, 1]} : vector<3x16x128xf32> to vector<1x16x128xf32>
    %23 = vector.shape_cast %22 : vector<1x16x128xf32> to vector<16x128xf32>
    %24 = vector.broadcast %21 : vector<1x128xf32> to vector<16x128xf32>
    %25 = arith.subf %24, %23 : vector<16x128xf32>
    %26 = arith.mulf %25, %25 : vector<16x128xf32>
    %27 = arith.addf %19, %26 : vector<16x128xf32>
    %c2 = arith.constant 2 : index
    %c0_15 = arith.constant 0 : index
    %c0_16 = arith.constant 0 : index
    %28 = vector.load %arg1[%c2, %c0_15, %c0_16] : memref<3x8x128xf32, #tpu.memory_space<vmem>>, vector<1x1x128xf32>
    %29 = vector.shape_cast %28 : vector<1x1x128xf32> to vector<1x128xf32>
    %30 = vector.extract_strided_slice %2 {offsets = [2, 0, 0], sizes = [1, 16, 128], strides = [1, 1, 1]} : vector<3x16x128xf32> to vector<1x16x128xf32>
    %31 = vector.shape_cast %30 : vector<1x16x128xf32> to vector<16x128xf32>
    %32 = vector.broadcast %29 : vector<1x128xf32> to vector<16x128xf32>
    %33 = arith.subf %32, %31 : vector<16x128xf32>
    %34 = arith.mulf %33, %33 : vector<16x128xf32>
    %35 = arith.addf %27, %34 : vector<16x128xf32>
    %36 = math.sqrt %35 : vector<16x128xf32>
    %cst_17 = arith.constant 0.833333313 : f32
    %37 = vector.broadcast %cst_17 : f32 to vector<16x128xf32>
    %38 = arith.mulf %36, %37 : vector<16x128xf32>
    %cst_18 = arith.constant 1.000000e+00 : f32
    %39 = vector.broadcast %cst_18 : f32 to vector<16x128xf32>
    %40 = arith.subf %39, %38 : vector<16x128xf32>
    %cst_19 = arith.constant 0.000000e+00 : f32
    %41 = vector.broadcast %cst_19 : f32 to vector<16x128xf32>
    %42 = arith.maximumf %40, %41 : vector<16x128xf32>
    %c0_20 = arith.constant 0 : index
    %c0_21 = arith.constant 0 : index
    %c0_22 = arith.constant 0 : index
    %43 = vector.load %arg2[%c0_20, %c0_21, %c0_22] : memref<8x8x128xf32, #tpu.memory_space<vmem>>, vector<1x1x128xf32>
    %44 = vector.shape_cast %43 : vector<1x1x128xf32> to vector<1x128xf32>
    %45 = vector.broadcast %44 : vector<1x128xf32> to vector<16x128xf32>
    %46 = arith.mulf %42, %45 : vector<16x128xf32>
    %47 = arith.addf %3, %46 : vector<16x128xf32>
    %c1_23 = arith.constant 1 : index
    %c0_24 = arith.constant 0 : index
    %c0_25 = arith.constant 0 : index
    %48 = vector.load %arg2[%c1_23, %c0_24, %c0_25] : memref<8x8x128xf32, #tpu.memory_space<vmem>>, vector<1x1x128xf32>
    %49 = vector.shape_cast %48 : vector<1x1x128xf32> to vector<1x128xf32>
    %50 = vector.broadcast %49 : vector<1x128xf32> to vector<16x128xf32>
    %51 = arith.mulf %42, %50 : vector<16x128xf32>
    %52 = arith.addf %4, %51 : vector<16x128xf32>
    %c2_26 = arith.constant 2 : index
    %c0_27 = arith.constant 0 : index
    %c0_28 = arith.constant 0 : index
    %53 = vector.load %arg2[%c2_26, %c0_27, %c0_28] : memref<8x8x128xf32, #tpu.memory_space<vmem>>, vector<1x1x128xf32>
    %54 = vector.shape_cast %53 : vector<1x1x128xf32> to vector<1x128xf32>
    %55 = vector.broadcast %54 : vector<1x128xf32> to vector<16x128xf32>
    %56 = arith.mulf %42, %55 : vector<16x128xf32>
    %57 = arith.addf %5, %56 : vector<16x128xf32>
    %c3 = arith.constant 3 : index
    %c0_29 = arith.constant 0 : index
    %c0_30 = arith.constant 0 : index
    %58 = vector.load %arg2[%c3, %c0_29, %c0_30] : memref<8x8x128xf32, #tpu.memory_space<vmem>>, vector<1x1x128xf32>
    %59 = vector.shape_cast %58 : vector<1x1x128xf32> to vector<1x128xf32>
    %60 = vector.broadcast %59 : vector<1x128xf32> to vector<16x128xf32>
    %61 = arith.mulf %42, %60 : vector<16x128xf32>
    %62 = arith.addf %6, %61 : vector<16x128xf32>
    %c4 = arith.constant 4 : index
    %c0_31 = arith.constant 0 : index
    %c0_32 = arith.constant 0 : index
    %63 = vector.load %arg2[%c4, %c0_31, %c0_32] : memref<8x8x128xf32, #tpu.memory_space<vmem>>, vector<1x1x128xf32>
    %64 = vector.shape_cast %63 : vector<1x1x128xf32> to vector<1x128xf32>
    %65 = vector.broadcast %64 : vector<1x128xf32> to vector<16x128xf32>
    %66 = arith.mulf %42, %65 : vector<16x128xf32>
    %67 = arith.addf %7, %66 : vector<16x128xf32>
    %c5 = arith.constant 5 : index
    %c0_33 = arith.constant 0 : index
    %c0_34 = arith.constant 0 : index
    %68 = vector.load %arg2[%c5, %c0_33, %c0_34] : memref<8x8x128xf32, #tpu.memory_space<vmem>>, vector<1x1x128xf32>
    %69 = vector.shape_cast %68 : vector<1x1x128xf32> to vector<1x128xf32>
    %70 = vector.broadcast %69 : vector<1x128xf32> to vector<16x128xf32>
    %71 = arith.mulf %42, %70 : vector<16x128xf32>
    %72 = arith.addf %8, %71 : vector<16x128xf32>
    %c6 = arith.constant 6 : index
    %c0_35 = arith.constant 0 : index
    %c0_36 = arith.constant 0 : index
    %73 = vector.load %arg2[%c6, %c0_35, %c0_36] : memref<8x8x128xf32, #tpu.memory_space<vmem>>, vector<1x1x128xf32>
    %74 = vector.shape_cast %73 : vector<1x1x128xf32> to vector<1x128xf32>
    %75 = vector.broadcast %74 : vector<1x128xf32> to vector<16x128xf32>
    %76 = arith.mulf %42, %75 : vector<16x128xf32>
    %77 = arith.addf %9, %76 : vector<16x128xf32>
    %c7 = arith.constant 7 : index
    %c0_37 = arith.constant 0 : index
    %c0_38 = arith.constant 0 : index
    %78 = vector.load %arg2[%c7, %c0_37, %c0_38] : memref<8x8x128xf32, #tpu.memory_space<vmem>>, vector<1x1x128xf32>
    %79 = vector.shape_cast %78 : vector<1x1x128xf32> to vector<1x128xf32>
    %80 = vector.broadcast %79 : vector<1x128xf32> to vector<16x128xf32>
    %81 = arith.mulf %42, %80 : vector<16x128xf32>
    %82 = arith.addf %10, %81 : vector<16x128xf32>
    %cst_39 = arith.constant 0.000000e+00 : f32
    %83 = vector.broadcast %cst_39 : f32 to vector<16x128xf32>
    %c0_40 = arith.constant 0 : index
    %c1_41 = arith.constant 1 : index
    %c0_42 = arith.constant 0 : index
    %84 = vector.load %arg1[%c0_40, %c1_41, %c0_42] : memref<3x8x128xf32, #tpu.memory_space<vmem>>, vector<1x1x128xf32>
    %85 = vector.shape_cast %84 : vector<1x1x128xf32> to vector<1x128xf32>
    %86 = vector.extract_strided_slice %2 {offsets = [0, 0, 0], sizes = [1, 16, 128], strides = [1, 1, 1]} : vector<3x16x128xf32> to vector<1x16x128xf32>
    %87 = vector.shape_cast %86 : vector<1x16x128xf32> to vector<16x128xf32>
    %88 = vector.broadcast %85 : vector<1x128xf32> to vector<16x128xf32>
    %89 = arith.subf %88, %87 : vector<16x128xf32>
    %90 = arith.mulf %89, %89 : vector<16x128xf32>
    %91 = arith.addf %83, %90 : vector<16x128xf32>
    %c1_43 = arith.constant 1 : index
    %c1_44 = arith.constant 1 : index
    %c0_45 = arith.constant 0 : index
    %92 = vector.load %arg1[%c1_43, %c1_44, %c0_45] : memref<3x8x128xf32, #tpu.memory_space<vmem>>, vector<1x1x128xf32>
    %93 = vector.shape_cast %92 : vector<1x1x128xf32> to vector<1x128xf32>
    %94 = vector.extract_strided_slice %2 {offsets = [1, 0, 0], sizes = [1, 16, 128], strides = [1, 1, 1]} : vector<3x16x128xf32> to vector<1x16x128xf32>
    %95 = vector.shape_cast %94 : vector<1x16x128xf32> to vector<16x128xf32>
    %96 = vector.broadcast %93 : vector<1x128xf32> to vector<16x128xf32>
    %97 = arith.subf %96, %95 : vector<16x128xf32>
    %98 = arith.mulf %97, %97 : vector<16x128xf32>
    %99 = arith.addf %91, %98 : vector<16x128xf32>
    %c2_46 = arith.constant 2 : index
    %c1_47 = arith.constant 1 : index
    %c0_48 = arith.constant 0 : index
    %100 = vector.load %arg1[%c2_46, %c1_47, %c0_48] : memref<3x8x128xf32, #tpu.memory_space<vmem>>, vector<1x1x128xf32>
    %101 = vector.shape_cast %100 : vector<1x1x128xf32> to vector<1x128xf32>
    %102 = vector.extract_strided_slice %2 {offsets = [2, 0, 0], sizes = [1, 16, 128], strides = [1, 1, 1]} : vector<3x16x128xf32> to vector<1x16x128xf32>
    %103 = vector.shape_cast %102 : vector<1x16x128xf32> to vector<16x128xf32>
    %104 = vector.broadcast %101 : vector<1x128xf32> to vector<16x128xf32>
    %105 = arith.subf %104, %103 : vector<16x128xf32>
    %106 = arith.mulf %105, %105 : vector<16x128xf32>
    %107 = arith.addf %99, %106 : vector<16x128xf32>
    %108 = math.sqrt %107 : vector<16x128xf32>
    %cst_49 = arith.constant 0.833333313 : f32
    %109 = vector.broadcast %cst_49 : f32 to vector<16x128xf32>
    %110 = arith.mulf %108, %109 : vector<16x128xf32>
    %cst_50 = arith.constant 1.000000e+00 : f32
    %111 = vector.broadcast %cst_50 : f32 to vector<16x128xf32>
    %112 = arith.subf %111, %110 : vector<16x128xf32>
    %cst_51 = arith.constant 0.000000e+00 : f32
    %113 = vector.broadcast %cst_51 : f32 to vector<16x128xf32>
    %114 = arith.maximumf %112, %113 : vector<16x128xf32>
    %c0_52 = arith.constant 0 : index
    %c1_53 = arith.constant 1 : index
    %c0_54 = arith.constant 0 : index
    %115 = vector.load %arg2[%c0_52, %c1_53, %c0_54] : memref<8x8x128xf32, #tpu.memory_space<vmem>>, vector<1x1x128xf32>
    %116 = vector.shape_cast %115 : vector<1x1x128xf32> to vector<1x128xf32>
    %117 = vector.broadcast %116 : vector<1x128xf32> to vector<16x128xf32>
    %118 = arith.mulf %114, %117 : vector<16x128xf32>
    %119 = arith.addf %47, %118 : vector<16x128xf32>
    %c1_55 = arith.constant 1 : index
    %c1_56 = arith.constant 1 : index
    %c0_57 = arith.constant 0 : index
    %120 = vector.load %arg2[%c1_55, %c1_56, %c0_57] : memref<8x8x128xf32, #tpu.memory_space<vmem>>, vector<1x1x128xf32>
    %121 = vector.shape_cast %120 : vector<1x1x128xf32> to vector<1x128xf32>
    %122 = vector.broadcast %121 : vector<1x128xf32> to vector<16x128xf32>
    %123 = arith.mulf %114, %122 : vector<16x128xf32>
    %124 = arith.addf %52, %123 : vector<16x128xf32>
    %c2_58 = arith.constant 2 : index
    %c1_59 = arith.constant 1 : index
    %c0_60 = arith.constant 0 : index
    %125 = vector.load %arg2[%c2_58, %c1_59, %c0_60] : memref<8x8x128xf32, #tpu.memory_space<vmem>>, vector<1x1x128xf32>
    %126 = vector.shape_cast %125 : vector<1x1x128xf32> to vector<1x128xf32>
    %127 = vector.broadcast %126 : vector<1x128xf32> to vector<16x128xf32>
    %128 = arith.mulf %114, %127 : vector<16x128xf32>
    %129 = arith.addf %57, %128 : vector<16x128xf32>
    %c3_61 = arith.constant 3 : index
    %c1_62 = arith.constant 1 : index
    %c0_63 = arith.constant 0 : index
    %130 = vector.load %arg2[%c3_61, %c1_62, %c0_63] : memref<8x8x128xf32, #tpu.memory_space<vmem>>, vector<1x1x128xf32>
    %131 = vector.shape_cast %130 : vector<1x1x128xf32> to vector<1x128xf32>
    %132 = vector.broadcast %131 : vector<1x128xf32> to vector<16x128xf32>
    %133 = arith.mulf %114, %132 : vector<16x128xf32>
    %134 = arith.addf %62, %133 : vector<16x128xf32>
    %c4_64 = arith.constant 4 : index
    %c1_65 = arith.constant 1 : index
    %c0_66 = arith.constant 0 : index
    %135 = vector.load %arg2[%c4_64, %c1_65, %c0_66] : memref<8x8x128xf32, #tpu.memory_space<vmem>>, vector<1x1x128xf32>
    %136 = vector.shape_cast %135 : vector<1x1x128xf32> to vector<1x128xf32>
    %137 = vector.broadcast %136 : vector<1x128xf32> to vector<16x128xf32>
    %138 = arith.mulf %114, %137 : vector<16x128xf32>
    %139 = arith.addf %67, %138 : vector<16x128xf32>
    %c5_67 = arith.constant 5 : index
    %c1_68 = arith.constant 1 : index
    %c0_69 = arith.constant 0 : index
    %140 = vector.load %arg2[%c5_67, %c1_68, %c0_69] : memref<8x8x128xf32, #tpu.memory_space<vmem>>, vector<1x1x128xf32>
    %141 = vector.shape_cast %140 : vector<1x1x128xf32> to vector<1x128xf32>
    %142 = vector.broadcast %141 : vector<1x128xf32> to vector<16x128xf32>
    %143 = arith.mulf %114, %142 : vector<16x128xf32>
    %144 = arith.addf %72, %143 : vector<16x128xf32>
    %c6_70 = arith.constant 6 : index
    %c1_71 = arith.constant 1 : index
    %c0_72 = arith.constant 0 : index
    %145 = vector.load %arg2[%c6_70, %c1_71, %c0_72] : memref<8x8x128xf32, #tpu.memory_space<vmem>>, vector<1x1x128xf32>
    %146 = vector.shape_cast %145 : vector<1x1x128xf32> to vector<1x128xf32>
    %147 = vector.broadcast %146 : vector<1x128xf32> to vector<16x128xf32>
    %148 = arith.mulf %114, %147 : vector<16x128xf32>
    %149 = arith.addf %77, %148 : vector<16x128xf32>
    %c7_73 = arith.constant 7 : index
    %c1_74 = arith.constant 1 : index
    %c0_75 = arith.constant 0 : index
    %150 = vector.load %arg2[%c7_73, %c1_74, %c0_75] : memref<8x8x128xf32, #tpu.memory_space<vmem>>, vector<1x1x128xf32>
    %151 = vector.shape_cast %150 : vector<1x1x128xf32> to vector<1x128xf32>
    %152 = vector.broadcast %151 : vector<1x128xf32> to vector<16x128xf32>
    %153 = arith.mulf %114, %152 : vector<16x128xf32>
    %154 = arith.addf %82, %153 : vector<16x128xf32>
    %cst_76 = arith.constant 0.000000e+00 : f32
    %155 = vector.broadcast %cst_76 : f32 to vector<16x128xf32>
    %c0_77 = arith.constant 0 : index
    %c2_78 = arith.constant 2 : index
    %c0_79 = arith.constant 0 : index
    %156 = vector.load %arg1[%c0_77, %c2_78, %c0_79] : memref<3x8x128xf32, #tpu.memory_space<vmem>>, vector<1x1x128xf32>
    %157 = vector.shape_cast %156 : vector<1x1x128xf32> to vector<1x128xf32>
    %158 = vector.extract_strided_slice %2 {offsets = [0, 0, 0], sizes = [1, 16, 128], strides = [1, 1, 1]} : vector<3x16x128xf32> to vector<1x16x128xf32>
    %159 = vector.shape_cast %158 : vector<1x16x128xf32> to vector<16x128xf32>
    %160 = vector.broadcast %157 : vector<1x128xf32> to vector<16x128xf32>
    %161 = arith.subf %160, %159 : vector<16x128xf32>
    %162 = arith.mulf %161, %161 : vector<16x128xf32>
    %163 = arith.addf %155, %162 : vector<16x128xf32>
    %c1_80 = arith.constant 1 : index
    %c2_81 = arith.constant 2 : index
    %c0_82 = arith.constant 0 : index
    %164 = vector.load %arg1[%c1_80, %c2_81, %c0_82] : memref<3x8x128xf32, #tpu.memory_space<vmem>>, vector<1x1x128xf32>
    %165 = vector.shape_cast %164 : vector<1x1x128xf32> to vector<1x128xf32>
    %166 = vector.extract_strided_slice %2 {offsets = [1, 0, 0], sizes = [1, 16, 128], strides = [1, 1, 1]} : vector<3x16x128xf32> to vector<1x16x128xf32>
    %167 = vector.shape_cast %166 : vector<1x16x128xf32> to vector<16x128xf32>
    %168 = vector.broadcast %165 : vector<1x128xf32> to vector<16x128xf32>
    %169 = arith.subf %168, %167 : vector<16x128xf32>
    %170 = arith.mulf %169, %169 : vector<16x128xf32>
    %171 = arith.addf %163, %170 : vector<16x128xf32>
    %c2_83 = arith.constant 2 : index
    %c2_84 = arith.constant 2 : index
    %c0_85 = arith.constant 0 : index
    %172 = vector.load %arg1[%c2_83, %c2_84, %c0_85] : memref<3x8x128xf32, #tpu.memory_space<vmem>>, vector<1x1x128xf32>
    %173 = vector.shape_cast %172 : vector<1x1x128xf32> to vector<1x128xf32>
    %174 = vector.extract_strided_slice %2 {offsets = [2, 0, 0], sizes = [1, 16, 128], strides = [1, 1, 1]} : vector<3x16x128xf32> to vector<1x16x128xf32>
    %175 = vector.shape_cast %174 : vector<1x16x128xf32> to vector<16x128xf32>
    %176 = vector.broadcast %173 : vector<1x128xf32> to vector<16x128xf32>
    %177 = arith.subf %176, %175 : vector<16x128xf32>
    %178 = arith.mulf %177, %177 : vector<16x128xf32>
    %179 = arith.addf %171, %178 : vector<16x128xf32>
    %180 = math.sqrt %179 : vector<16x128xf32>
    %cst_86 = arith.constant 0.833333313 : f32
    %181 = vector.broadcast %cst_86 : f32 to vector<16x128xf32>
    %182 = arith.mulf %180, %181 : vector<16x128xf32>
    %cst_87 = arith.constant 1.000000e+00 : f32
    %183 = vector.broadcast %cst_87 : f32 to vector<16x128xf32>
    %184 = arith.subf %183, %182 : vector<16x128xf32>
    %cst_88 = arith.constant 0.000000e+00 : f32
    %185 = vector.broadcast %cst_88 : f32 to vector<16x128xf32>
    %186 = arith.maximumf %184, %185 : vector<16x128xf32>
    %c0_89 = arith.constant 0 : index
    %c2_90 = arith.constant 2 : index
    %c0_91 = arith.constant 0 : index
    %187 = vector.load %arg2[%c0_89, %c2_90, %c0_91] : memref<8x8x128xf32, #tpu.memory_space<vmem>>, vector<1x1x128xf32>
    %188 = vector.shape_cast %187 : vector<1x1x128xf32> to vector<1x128xf32>
    %189 = vector.broadcast %188 : vector<1x128xf32> to vector<16x128xf32>
    %190 = arith.mulf %186, %189 : vector<16x128xf32>
    %191 = arith.addf %119, %190 : vector<16x128xf32>
    %c1_92 = arith.constant 1 : index
    %c2_93 = arith.constant 2 : index
    %c0_94 = arith.constant 0 : index
    %192 = vector.load %arg2[%c1_92, %c2_93, %c0_94] : memref<8x8x128xf32, #tpu.memory_space<vmem>>, vector<1x1x128xf32>
    %193 = vector.shape_cast %192 : vector<1x1x128xf32> to vector<1x128xf32>
    %194 = vector.broadcast %193 : vector<1x128xf32> to vector<16x128xf32>
    %195 = arith.mulf %186, %194 : vector<16x128xf32>
    %196 = arith.addf %124, %195 : vector<16x128xf32>
    %c2_95 = arith.constant 2 : index
    %c2_96 = arith.constant 2 : index
    %c0_97 = arith.constant 0 : index
    %197 = vector.load %arg2[%c2_95, %c2_96, %c0_97] : memref<8x8x128xf32, #tpu.memory_space<vmem>>, vector<1x1x128xf32>
    %198 = vector.shape_cast %197 : vector<1x1x128xf32> to vector<1x128xf32>
    %199 = vector.broadcast %198 : vector<1x128xf32> to vector<16x128xf32>
    %200 = arith.mulf %186, %199 : vector<16x128xf32>
    %201 = arith.addf %129, %200 : vector<16x128xf32>
    %c3_98 = arith.constant 3 : index
    %c2_99 = arith.constant 2 : index
    %c0_100 = arith.constant 0 : index
    %202 = vector.load %arg2[%c3_98, %c2_99, %c0_100] : memref<8x8x128xf32, #tpu.memory_space<vmem>>, vector<1x1x128xf32>
    %203 = vector.shape_cast %202 : vector<1x1x128xf32> to vector<1x128xf32>
    %204 = vector.broadcast %203 : vector<1x128xf32> to vector<16x128xf32>
    %205 = arith.mulf %186, %204 : vector<16x128xf32>
    %206 = arith.addf %134, %205 : vector<16x128xf32>
    %c4_101 = arith.constant 4 : index
    %c2_102 = arith.constant 2 : index
    %c0_103 = arith.constant 0 : index
    %207 = vector.load %arg2[%c4_101, %c2_102, %c0_103] : memref<8x8x128xf32, #tpu.memory_space<vmem>>, vector<1x1x128xf32>
    %208 = vector.shape_cast %207 : vector<1x1x128xf32> to vector<1x128xf32>
    %209 = vector.broadcast %208 : vector<1x128xf32> to vector<16x128xf32>
    %210 = arith.mulf %186, %209 : vector<16x128xf32>
    %211 = arith.addf %139, %210 : vector<16x128xf32>
    %c5_104 = arith.constant 5 : index
    %c2_105 = arith.constant 2 : index
    %c0_106 = arith.constant 0 : index
    %212 = vector.load %arg2[%c5_104, %c2_105, %c0_106] : memref<8x8x128xf32, #tpu.memory_space<vmem>>, vector<1x1x128xf32>
    %213 = vector.shape_cast %212 : vector<1x1x128xf32> to vector<1x128xf32>
    %214 = vector.broadcast %213 : vector<1x128xf32> to vector<16x128xf32>
    %215 = arith.mulf %186, %214 : vector<16x128xf32>
    %216 = arith.addf %144, %215 : vector<16x128xf32>
    %c6_107 = arith.constant 6 : index
    %c2_108 = arith.constant 2 : index
    %c0_109 = arith.constant 0 : index
    %217 = vector.load %arg2[%c6_107, %c2_108, %c0_109] : memref<8x8x128xf32, #tpu.memory_space<vmem>>, vector<1x1x128xf32>
    %218 = vector.shape_cast %217 : vector<1x1x128xf32> to vector<1x128xf32>
    %219 = vector.broadcast %218 : vector<1x128xf32> to vector<16x128xf32>
    %220 = arith.mulf %186, %219 : vector<16x128xf32>
    %221 = arith.addf %149, %220 : vector<16x128xf32>
    %c7_110 = arith.constant 7 : index
    %c2_111 = arith.constant 2 : index
    %c0_112 = arith.constant 0 : index
    %222 = vector.load %arg2[%c7_110, %c2_111, %c0_112] : memref<8x8x128xf32, #tpu.memory_space<vmem>>, vector<1x1x128xf32>
    %223 = vector.shape_cast %222 : vector<1x1x128xf32> to vector<1x128xf32>
    %224 = vector.broadcast %223 : vector<1x128xf32> to vector<16x128xf32>
    %225 = arith.mulf %186, %224 : vector<16x128xf32>
    %226 = arith.addf %154, %225 : vector<16x128xf32>
    %cst_113 = arith.constant 0.000000e+00 : f32
    %227 = vector.broadcast %cst_113 : f32 to vector<16x128xf32>
    %c0_114 = arith.constant 0 : index
    %c3_115 = arith.constant 3 : index
    %c0_116 = arith.constant 0 : index
    %228 = vector.load %arg1[%c0_114, %c3_115, %c0_116] : memref<3x8x128xf32, #tpu.memory_space<vmem>>, vector<1x1x128xf32>
    %229 = vector.shape_cast %228 : vector<1x1x128xf32> to vector<1x128xf32>
    %230 = vector.extract_strided_slice %2 {offsets = [0, 0, 0], sizes = [1, 16, 128], strides = [1, 1, 1]} : vector<3x16x128xf32> to vector<1x16x128xf32>
    %231 = vector.shape_cast %230 : vector<1x16x128xf32> to vector<16x128xf32>
    %232 = vector.broadcast %229 : vector<1x128xf32> to vector<16x128xf32>
    %233 = arith.subf %232, %231 : vector<16x128xf32>
    %234 = arith.mulf %233, %233 : vector<16x128xf32>
    %235 = arith.addf %227, %234 : vector<16x128xf32>
    %c1_117 = arith.constant 1 : index
    %c3_118 = arith.constant 3 : index
    %c0_119 = arith.constant 0 : index
    %236 = vector.load %arg1[%c1_117, %c3_118, %c0_119] : memref<3x8x128xf32, #tpu.memory_space<vmem>>, vector<1x1x128xf32>
    %237 = vector.shape_cast %236 : vector<1x1x128xf32> to vector<1x128xf32>
    %238 = vector.extract_strided_slice %2 {offsets = [1, 0, 0], sizes = [1, 16, 128], strides = [1, 1, 1]} : vector<3x16x128xf32> to vector<1x16x128xf32>
    %239 = vector.shape_cast %238 : vector<1x16x128xf32> to vector<16x128xf32>
    %240 = vector.broadcast %237 : vector<1x128xf32> to vector<16x128xf32>
    %241 = arith.subf %240, %239 : vector<16x128xf32>
    %242 = arith.mulf %241, %241 : vector<16x128xf32>
    %243 = arith.addf %235, %242 : vector<16x128xf32>
    %c2_120 = arith.constant 2 : index
    %c3_121 = arith.constant 3 : index
    %c0_122 = arith.constant 0 : index
    %244 = vector.load %arg1[%c2_120, %c3_121, %c0_122] : memref<3x8x128xf32, #tpu.memory_space<vmem>>, vector<1x1x128xf32>
    %245 = vector.shape_cast %244 : vector<1x1x128xf32> to vector<1x128xf32>
    %246 = vector.extract_strided_slice %2 {offsets = [2, 0, 0], sizes = [1, 16, 128], strides = [1, 1, 1]} : vector<3x16x128xf32> to vector<1x16x128xf32>
    %247 = vector.shape_cast %246 : vector<1x16x128xf32> to vector<16x128xf32>
    %248 = vector.broadcast %245 : vector<1x128xf32> to vector<16x128xf32>
    %249 = arith.subf %248, %247 : vector<16x128xf32>
    %250 = arith.mulf %249, %249 : vector<16x128xf32>
    %251 = arith.addf %243, %250 : vector<16x128xf32>
    %252 = math.sqrt %251 : vector<16x128xf32>
    %cst_123 = arith.constant 0.833333313 : f32
    %253 = vector.broadcast %cst_123 : f32 to vector<16x128xf32>
    %254 = arith.mulf %252, %253 : vector<16x128xf32>
    %cst_124 = arith.constant 1.000000e+00 : f32
    %255 = vector.broadcast %cst_124 : f32 to vector<16x128xf32>
    %256 = arith.subf %255, %254 : vector<16x128xf32>
    %cst_125 = arith.constant 0.000000e+00 : f32
    %257 = vector.broadcast %cst_125 : f32 to vector<16x128xf32>
    %258 = arith.maximumf %256, %257 : vector<16x128xf32>
    %c0_126 = arith.constant 0 : index
    %c3_127 = arith.constant 3 : index
    %c0_128 = arith.constant 0 : index
    %259 = vector.load %arg2[%c0_126, %c3_127, %c0_128] : memref<8x8x128xf32, #tpu.memory_space<vmem>>, vector<1x1x128xf32>
    %260 = vector.shape_cast %259 : vector<1x1x128xf32> to vector<1x128xf32>
    %261 = vector.broadcast %260 : vector<1x128xf32> to vector<16x128xf32>
    %262 = arith.mulf %258, %261 : vector<16x128xf32>
    %263 = arith.addf %191, %262 : vector<16x128xf32>
    %c1_129 = arith.constant 1 : index
    %c3_130 = arith.constant 3 : index
    %c0_131 = arith.constant 0 : index
    %264 = vector.load %arg2[%c1_129, %c3_130, %c0_131] : memref<8x8x128xf32, #tpu.memory_space<vmem>>, vector<1x1x128xf32>
    %265 = vector.shape_cast %264 : vector<1x1x128xf32> to vector<1x128xf32>
    %266 = vector.broadcast %265 : vector<1x128xf32> to vector<16x128xf32>
    %267 = arith.mulf %258, %266 : vector<16x128xf32>
    %268 = arith.addf %196, %267 : vector<16x128xf32>
    %c2_132 = arith.constant 2 : index
    %c3_133 = arith.constant 3 : index
    %c0_134 = arith.constant 0 : index
    %269 = vector.load %arg2[%c2_132, %c3_133, %c0_134] : memref<8x8x128xf32, #tpu.memory_space<vmem>>, vector<1x1x128xf32>
    %270 = vector.shape_cast %269 : vector<1x1x128xf32> to vector<1x128xf32>
    %271 = vector.broadcast %270 : vector<1x128xf32> to vector<16x128xf32>
    %272 = arith.mulf %258, %271 : vector<16x128xf32>
    %273 = arith.addf %201, %272 : vector<16x128xf32>
    %c3_135 = arith.constant 3 : index
    %c3_136 = arith.constant 3 : index
    %c0_137 = arith.constant 0 : index
    %274 = vector.load %arg2[%c3_135, %c3_136, %c0_137] : memref<8x8x128xf32, #tpu.memory_space<vmem>>, vector<1x1x128xf32>
    %275 = vector.shape_cast %274 : vector<1x1x128xf32> to vector<1x128xf32>
    %276 = vector.broadcast %275 : vector<1x128xf32> to vector<16x128xf32>
    %277 = arith.mulf %258, %276 : vector<16x128xf32>
    %278 = arith.addf %206, %277 : vector<16x128xf32>
    %c4_138 = arith.constant 4 : index
    %c3_139 = arith.constant 3 : index
    %c0_140 = arith.constant 0 : index
    %279 = vector.load %arg2[%c4_138, %c3_139, %c0_140] : memref<8x8x128xf32, #tpu.memory_space<vmem>>, vector<1x1x128xf32>
    %280 = vector.shape_cast %279 : vector<1x1x128xf32> to vector<1x128xf32>
    %281 = vector.broadcast %280 : vector<1x128xf32> to vector<16x128xf32>
    %282 = arith.mulf %258, %281 : vector<16x128xf32>
    %283 = arith.addf %211, %282 : vector<16x128xf32>
    %c5_141 = arith.constant 5 : index
    %c3_142 = arith.constant 3 : index
    %c0_143 = arith.constant 0 : index
    %284 = vector.load %arg2[%c5_141, %c3_142, %c0_143] : memref<8x8x128xf32, #tpu.memory_space<vmem>>, vector<1x1x128xf32>
    %285 = vector.shape_cast %284 : vector<1x1x128xf32> to vector<1x128xf32>
    %286 = vector.broadcast %285 : vector<1x128xf32> to vector<16x128xf32>
    %287 = arith.mulf %258, %286 : vector<16x128xf32>
    %288 = arith.addf %216, %287 : vector<16x128xf32>
    %c6_144 = arith.constant 6 : index
    %c3_145 = arith.constant 3 : index
    %c0_146 = arith.constant 0 : index
    %289 = vector.load %arg2[%c6_144, %c3_145, %c0_146] : memref<8x8x128xf32, #tpu.memory_space<vmem>>, vector<1x1x128xf32>
    %290 = vector.shape_cast %289 : vector<1x1x128xf32> to vector<1x128xf32>
    %291 = vector.broadcast %290 : vector<1x128xf32> to vector<16x128xf32>
    %292 = arith.mulf %258, %291 : vector<16x128xf32>
    %293 = arith.addf %221, %292 : vector<16x128xf32>
    %c7_147 = arith.constant 7 : index
    %c3_148 = arith.constant 3 : index
    %c0_149 = arith.constant 0 : index
    %294 = vector.load %arg2[%c7_147, %c3_148, %c0_149] : memref<8x8x128xf32, #tpu.memory_space<vmem>>, vector<1x1x128xf32>
    %295 = vector.shape_cast %294 : vector<1x1x128xf32> to vector<1x128xf32>
    %296 = vector.broadcast %295 : vector<1x128xf32> to vector<16x128xf32>
    %297 = arith.mulf %258, %296 : vector<16x128xf32>
    %298 = arith.addf %226, %297 : vector<16x128xf32>
    %cst_150 = arith.constant 0.000000e+00 : f32
    %299 = vector.broadcast %cst_150 : f32 to vector<16x128xf32>
    %c0_151 = arith.constant 0 : index
    %c4_152 = arith.constant 4 : index
    %c0_153 = arith.constant 0 : index
    %300 = vector.load %arg1[%c0_151, %c4_152, %c0_153] : memref<3x8x128xf32, #tpu.memory_space<vmem>>, vector<1x1x128xf32>
    %301 = vector.shape_cast %300 : vector<1x1x128xf32> to vector<1x128xf32>
    %302 = vector.extract_strided_slice %2 {offsets = [0, 0, 0], sizes = [1, 16, 128], strides = [1, 1, 1]} : vector<3x16x128xf32> to vector<1x16x128xf32>
    %303 = vector.shape_cast %302 : vector<1x16x128xf32> to vector<16x128xf32>
    %304 = vector.broadcast %301 : vector<1x128xf32> to vector<16x128xf32>
    %305 = arith.subf %304, %303 : vector<16x128xf32>
    %306 = arith.mulf %305, %305 : vector<16x128xf32>
    %307 = arith.addf %299, %306 : vector<16x128xf32>
    %c1_154 = arith.constant 1 : index
    %c4_155 = arith.constant 4 : index
    %c0_156 = arith.constant 0 : index
    %308 = vector.load %arg1[%c1_154, %c4_155, %c0_156] : memref<3x8x128xf32, #tpu.memory_space<vmem>>, vector<1x1x128xf32>
    %309 = vector.shape_cast %308 : vector<1x1x128xf32> to vector<1x128xf32>
    %310 = vector.extract_strided_slice %2 {offsets = [1, 0, 0], sizes = [1, 16, 128], strides = [1, 1, 1]} : vector<3x16x128xf32> to vector<1x16x128xf32>
    %311 = vector.shape_cast %310 : vector<1x16x128xf32> to vector<16x128xf32>
    %312 = vector.broadcast %309 : vector<1x128xf32> to vector<16x128xf32>
    %313 = arith.subf %312, %311 : vector<16x128xf32>
    %314 = arith.mulf %313, %313 : vector<16x128xf32>
    %315 = arith.addf %307, %314 : vector<16x128xf32>
    %c2_157 = arith.constant 2 : index
    %c4_158 = arith.constant 4 : index
    %c0_159 = arith.constant 0 : index
    %316 = vector.load %arg1[%c2_157, %c4_158, %c0_159] : memref<3x8x128xf32, #tpu.memory_space<vmem>>, vector<1x1x128xf32>
    %317 = vector.shape_cast %316 : vector<1x1x128xf32> to vector<1x128xf32>
    %318 = vector.extract_strided_slice %2 {offsets = [2, 0, 0], sizes = [1, 16, 128], strides = [1, 1, 1]} : vector<3x16x128xf32> to vector<1x16x128xf32>
    %319 = vector.shape_cast %318 : vector<1x16x128xf32> to vector<16x128xf32>
    %320 = vector.broadcast %317 : vector<1x128xf32> to vector<16x128xf32>
    %321 = arith.subf %320, %319 : vector<16x128xf32>
    %322 = arith.mulf %321, %321 : vector<16x128xf32>
    %323 = arith.addf %315, %322 : vector<16x128xf32>
    %324 = math.sqrt %323 : vector<16x128xf32>
    %cst_160 = arith.constant 0.833333313 : f32
    %325 = vector.broadcast %cst_160 : f32 to vector<16x128xf32>
    %326 = arith.mulf %324, %325 : vector<16x128xf32>
    %cst_161 = arith.constant 1.000000e+00 : f32
    %327 = vector.broadcast %cst_161 : f32 to vector<16x128xf32>
    %328 = arith.subf %327, %326 : vector<16x128xf32>
    %cst_162 = arith.constant 0.000000e+00 : f32
    %329 = vector.broadcast %cst_162 : f32 to vector<16x128xf32>
    %330 = arith.maximumf %328, %329 : vector<16x128xf32>
    %c0_163 = arith.constant 0 : index
    %c4_164 = arith.constant 4 : index
    %c0_165 = arith.constant 0 : index
    %331 = vector.load %arg2[%c0_163, %c4_164, %c0_165] : memref<8x8x128xf32, #tpu.memory_space<vmem>>, vector<1x1x128xf32>
    %332 = vector.shape_cast %331 : vector<1x1x128xf32> to vector<1x128xf32>
    %333 = vector.broadcast %332 : vector<1x128xf32> to vector<16x128xf32>
    %334 = arith.mulf %330, %333 : vector<16x128xf32>
    %335 = arith.addf %263, %334 : vector<16x128xf32>
    %c1_166 = arith.constant 1 : index
    %c4_167 = arith.constant 4 : index
    %c0_168 = arith.constant 0 : index
    %336 = vector.load %arg2[%c1_166, %c4_167, %c0_168] : memref<8x8x128xf32, #tpu.memory_space<vmem>>, vector<1x1x128xf32>
    %337 = vector.shape_cast %336 : vector<1x1x128xf32> to vector<1x128xf32>
    %338 = vector.broadcast %337 : vector<1x128xf32> to vector<16x128xf32>
    %339 = arith.mulf %330, %338 : vector<16x128xf32>
    %340 = arith.addf %268, %339 : vector<16x128xf32>
    %c2_169 = arith.constant 2 : index
    %c4_170 = arith.constant 4 : index
    %c0_171 = arith.constant 0 : index
    %341 = vector.load %arg2[%c2_169, %c4_170, %c0_171] : memref<8x8x128xf32, #tpu.memory_space<vmem>>, vector<1x1x128xf32>
    %342 = vector.shape_cast %341 : vector<1x1x128xf32> to vector<1x128xf32>
    %343 = vector.broadcast %342 : vector<1x128xf32> to vector<16x128xf32>
    %344 = arith.mulf %330, %343 : vector<16x128xf32>
    %345 = arith.addf %273, %344 : vector<16x128xf32>
    %c3_172 = arith.constant 3 : index
    %c4_173 = arith.constant 4 : index
    %c0_174 = arith.constant 0 : index
    %346 = vector.load %arg2[%c3_172, %c4_173, %c0_174] : memref<8x8x128xf32, #tpu.memory_space<vmem>>, vector<1x1x128xf32>
    %347 = vector.shape_cast %346 : vector<1x1x128xf32> to vector<1x128xf32>
    %348 = vector.broadcast %347 : vector<1x128xf32> to vector<16x128xf32>
    %349 = arith.mulf %330, %348 : vector<16x128xf32>
    %350 = arith.addf %278, %349 : vector<16x128xf32>
    %c4_175 = arith.constant 4 : index
    %c4_176 = arith.constant 4 : index
    %c0_177 = arith.constant 0 : index
    %351 = vector.load %arg2[%c4_175, %c4_176, %c0_177] : memref<8x8x128xf32, #tpu.memory_space<vmem>>, vector<1x1x128xf32>
    %352 = vector.shape_cast %351 : vector<1x1x128xf32> to vector<1x128xf32>
    %353 = vector.broadcast %352 : vector<1x128xf32> to vector<16x128xf32>
    %354 = arith.mulf %330, %353 : vector<16x128xf32>
    %355 = arith.addf %283, %354 : vector<16x128xf32>
    %c5_178 = arith.constant 5 : index
    %c4_179 = arith.constant 4 : index
    %c0_180 = arith.constant 0 : index
    %356 = vector.load %arg2[%c5_178, %c4_179, %c0_180] : memref<8x8x128xf32, #tpu.memory_space<vmem>>, vector<1x1x128xf32>
    %357 = vector.shape_cast %356 : vector<1x1x128xf32> to vector<1x128xf32>
    %358 = vector.broadcast %357 : vector<1x128xf32> to vector<16x128xf32>
    %359 = arith.mulf %330, %358 : vector<16x128xf32>
    %360 = arith.addf %288, %359 : vector<16x128xf32>
    %c6_181 = arith.constant 6 : index
    %c4_182 = arith.constant 4 : index
    %c0_183 = arith.constant 0 : index
    %361 = vector.load %arg2[%c6_181, %c4_182, %c0_183] : memref<8x8x128xf32, #tpu.memory_space<vmem>>, vector<1x1x128xf32>
    %362 = vector.shape_cast %361 : vector<1x1x128xf32> to vector<1x128xf32>
    %363 = vector.broadcast %362 : vector<1x128xf32> to vector<16x128xf32>
    %364 = arith.mulf %330, %363 : vector<16x128xf32>
    %365 = arith.addf %293, %364 : vector<16x128xf32>
    %c7_184 = arith.constant 7 : index
    %c4_185 = arith.constant 4 : index
    %c0_186 = arith.constant 0 : index
    %366 = vector.load %arg2[%c7_184, %c4_185, %c0_186] : memref<8x8x128xf32, #tpu.memory_space<vmem>>, vector<1x1x128xf32>
    %367 = vector.shape_cast %366 : vector<1x1x128xf32> to vector<1x128xf32>
    %368 = vector.broadcast %367 : vector<1x128xf32> to vector<16x128xf32>
    %369 = arith.mulf %330, %368 : vector<16x128xf32>
    %370 = arith.addf %298, %369 : vector<16x128xf32>
    %cst_187 = arith.constant 0.000000e+00 : f32
    %371 = vector.broadcast %cst_187 : f32 to vector<16x128xf32>
    %c0_188 = arith.constant 0 : index
    %c5_189 = arith.constant 5 : index
    %c0_190 = arith.constant 0 : index
    %372 = vector.load %arg1[%c0_188, %c5_189, %c0_190] : memref<3x8x128xf32, #tpu.memory_space<vmem>>, vector<1x1x128xf32>
    %373 = vector.shape_cast %372 : vector<1x1x128xf32> to vector<1x128xf32>
    %374 = vector.extract_strided_slice %2 {offsets = [0, 0, 0], sizes = [1, 16, 128], strides = [1, 1, 1]} : vector<3x16x128xf32> to vector<1x16x128xf32>
    %375 = vector.shape_cast %374 : vector<1x16x128xf32> to vector<16x128xf32>
    %376 = vector.broadcast %373 : vector<1x128xf32> to vector<16x128xf32>
    %377 = arith.subf %376, %375 : vector<16x128xf32>
    %378 = arith.mulf %377, %377 : vector<16x128xf32>
    %379 = arith.addf %371, %378 : vector<16x128xf32>
    %c1_191 = arith.constant 1 : index
    %c5_192 = arith.constant 5 : index
    %c0_193 = arith.constant 0 : index
    %380 = vector.load %arg1[%c1_191, %c5_192, %c0_193] : memref<3x8x128xf32, #tpu.memory_space<vmem>>, vector<1x1x128xf32>
    %381 = vector.shape_cast %380 : vector<1x1x128xf32> to vector<1x128xf32>
    %382 = vector.extract_strided_slice %2 {offsets = [1, 0, 0], sizes = [1, 16, 128], strides = [1, 1, 1]} : vector<3x16x128xf32> to vector<1x16x128xf32>
    %383 = vector.shape_cast %382 : vector<1x16x128xf32> to vector<16x128xf32>
    %384 = vector.broadcast %381 : vector<1x128xf32> to vector<16x128xf32>
    %385 = arith.subf %384, %383 : vector<16x128xf32>
    %386 = arith.mulf %385, %385 : vector<16x128xf32>
    %387 = arith.addf %379, %386 : vector<16x128xf32>
    %c2_194 = arith.constant 2 : index
    %c5_195 = arith.constant 5 : index
    %c0_196 = arith.constant 0 : index
    %388 = vector.load %arg1[%c2_194, %c5_195, %c0_196] : memref<3x8x128xf32, #tpu.memory_space<vmem>>, vector<1x1x128xf32>
    %389 = vector.shape_cast %388 : vector<1x1x128xf32> to vector<1x128xf32>
    %390 = vector.extract_strided_slice %2 {offsets = [2, 0, 0], sizes = [1, 16, 128], strides = [1, 1, 1]} : vector<3x16x128xf32> to vector<1x16x128xf32>
    %391 = vector.shape_cast %390 : vector<1x16x128xf32> to vector<16x128xf32>
    %392 = vector.broadcast %389 : vector<1x128xf32> to vector<16x128xf32>
    %393 = arith.subf %392, %391 : vector<16x128xf32>
    %394 = arith.mulf %393, %393 : vector<16x128xf32>
    %395 = arith.addf %387, %394 : vector<16x128xf32>
    %396 = math.sqrt %395 : vector<16x128xf32>
    %cst_197 = arith.constant 0.833333313 : f32
    %397 = vector.broadcast %cst_197 : f32 to vector<16x128xf32>
    %398 = arith.mulf %396, %397 : vector<16x128xf32>
    %cst_198 = arith.constant 1.000000e+00 : f32
    %399 = vector.broadcast %cst_198 : f32 to vector<16x128xf32>
    %400 = arith.subf %399, %398 : vector<16x128xf32>
    %cst_199 = arith.constant 0.000000e+00 : f32
    %401 = vector.broadcast %cst_199 : f32 to vector<16x128xf32>
    %402 = arith.maximumf %400, %401 : vector<16x128xf32>
    %c0_200 = arith.constant 0 : index
    %c5_201 = arith.constant 5 : index
    %c0_202 = arith.constant 0 : index
    %403 = vector.load %arg2[%c0_200, %c5_201, %c0_202] : memref<8x8x128xf32, #tpu.memory_space<vmem>>, vector<1x1x128xf32>
    %404 = vector.shape_cast %403 : vector<1x1x128xf32> to vector<1x128xf32>
    %405 = vector.broadcast %404 : vector<1x128xf32> to vector<16x128xf32>
    %406 = arith.mulf %402, %405 : vector<16x128xf32>
    %407 = arith.addf %335, %406 : vector<16x128xf32>
    %c1_203 = arith.constant 1 : index
    %c5_204 = arith.constant 5 : index
    %c0_205 = arith.constant 0 : index
    %408 = vector.load %arg2[%c1_203, %c5_204, %c0_205] : memref<8x8x128xf32, #tpu.memory_space<vmem>>, vector<1x1x128xf32>
    %409 = vector.shape_cast %408 : vector<1x1x128xf32> to vector<1x128xf32>
    %410 = vector.broadcast %409 : vector<1x128xf32> to vector<16x128xf32>
    %411 = arith.mulf %402, %410 : vector<16x128xf32>
    %412 = arith.addf %340, %411 : vector<16x128xf32>
    %c2_206 = arith.constant 2 : index
    %c5_207 = arith.constant 5 : index
    %c0_208 = arith.constant 0 : index
    %413 = vector.load %arg2[%c2_206, %c5_207, %c0_208] : memref<8x8x128xf32, #tpu.memory_space<vmem>>, vector<1x1x128xf32>
    %414 = vector.shape_cast %413 : vector<1x1x128xf32> to vector<1x128xf32>
    %415 = vector.broadcast %414 : vector<1x128xf32> to vector<16x128xf32>
    %416 = arith.mulf %402, %415 : vector<16x128xf32>
    %417 = arith.addf %345, %416 : vector<16x128xf32>
    %c3_209 = arith.constant 3 : index
    %c5_210 = arith.constant 5 : index
    %c0_211 = arith.constant 0 : index
    %418 = vector.load %arg2[%c3_209, %c5_210, %c0_211] : memref<8x8x128xf32, #tpu.memory_space<vmem>>, vector<1x1x128xf32>
    %419 = vector.shape_cast %418 : vector<1x1x128xf32> to vector<1x128xf32>
    %420 = vector.broadcast %419 : vector<1x128xf32> to vector<16x128xf32>
    %421 = arith.mulf %402, %420 : vector<16x128xf32>
    %422 = arith.addf %350, %421 : vector<16x128xf32>
    %c4_212 = arith.constant 4 : index
    %c5_213 = arith.constant 5 : index
    %c0_214 = arith.constant 0 : index
    %423 = vector.load %arg2[%c4_212, %c5_213, %c0_214] : memref<8x8x128xf32, #tpu.memory_space<vmem>>, vector<1x1x128xf32>
    %424 = vector.shape_cast %423 : vector<1x1x128xf32> to vector<1x128xf32>
    %425 = vector.broadcast %424 : vector<1x128xf32> to vector<16x128xf32>
    %426 = arith.mulf %402, %425 : vector<16x128xf32>
    %427 = arith.addf %355, %426 : vector<16x128xf32>
    %c5_215 = arith.constant 5 : index
    %c5_216 = arith.constant 5 : index
    %c0_217 = arith.constant 0 : index
    %428 = vector.load %arg2[%c5_215, %c5_216, %c0_217] : memref<8x8x128xf32, #tpu.memory_space<vmem>>, vector<1x1x128xf32>
    %429 = vector.shape_cast %428 : vector<1x1x128xf32> to vector<1x128xf32>
    %430 = vector.broadcast %429 : vector<1x128xf32> to vector<16x128xf32>
    %431 = arith.mulf %402, %430 : vector<16x128xf32>
    %432 = arith.addf %360, %431 : vector<16x128xf32>
    %c6_218 = arith.constant 6 : index
    %c5_219 = arith.constant 5 : index
    %c0_220 = arith.constant 0 : index
    %433 = vector.load %arg2[%c6_218, %c5_219, %c0_220] : memref<8x8x128xf32, #tpu.memory_space<vmem>>, vector<1x1x128xf32>
    %434 = vector.shape_cast %433 : vector<1x1x128xf32> to vector<1x128xf32>
    %435 = vector.broadcast %434 : vector<1x128xf32> to vector<16x128xf32>
    %436 = arith.mulf %402, %435 : vector<16x128xf32>
    %437 = arith.addf %365, %436 : vector<16x128xf32>
    %c7_221 = arith.constant 7 : index
    %c5_222 = arith.constant 5 : index
    %c0_223 = arith.constant 0 : index
    %438 = vector.load %arg2[%c7_221, %c5_222, %c0_223] : memref<8x8x128xf32, #tpu.memory_space<vmem>>, vector<1x1x128xf32>
    %439 = vector.shape_cast %438 : vector<1x1x128xf32> to vector<1x128xf32>
    %440 = vector.broadcast %439 : vector<1x128xf32> to vector<16x128xf32>
    %441 = arith.mulf %402, %440 : vector<16x128xf32>
    %442 = arith.addf %370, %441 : vector<16x128xf32>
    %cst_224 = arith.constant 0.000000e+00 : f32
    %443 = vector.broadcast %cst_224 : f32 to vector<16x128xf32>
    %c0_225 = arith.constant 0 : index
    %c6_226 = arith.constant 6 : index
    %c0_227 = arith.constant 0 : index
    %444 = vector.load %arg1[%c0_225, %c6_226, %c0_227] : memref<3x8x128xf32, #tpu.memory_space<vmem>>, vector<1x1x128xf32>
    %445 = vector.shape_cast %444 : vector<1x1x128xf32> to vector<1x128xf32>
    %446 = vector.extract_strided_slice %2 {offsets = [0, 0, 0], sizes = [1, 16, 128], strides = [1, 1, 1]} : vector<3x16x128xf32> to vector<1x16x128xf32>
    %447 = vector.shape_cast %446 : vector<1x16x128xf32> to vector<16x128xf32>
    %448 = vector.broadcast %445 : vector<1x128xf32> to vector<16x128xf32>
    %449 = arith.subf %448, %447 : vector<16x128xf32>
    %450 = arith.mulf %449, %449 : vector<16x128xf32>
    %451 = arith.addf %443, %450 : vector<16x128xf32>
    %c1_228 = arith.constant 1 : index
    %c6_229 = arith.constant 6 : index
    %c0_230 = arith.constant 0 : index
    %452 = vector.load %arg1[%c1_228, %c6_229, %c0_230] : memref<3x8x128xf32, #tpu.memory_space<vmem>>, vector<1x1x128xf32>
    %453 = vector.shape_cast %452 : vector<1x1x128xf32> to vector<1x128xf32>
    %454 = vector.extract_strided_slice %2 {offsets = [1, 0, 0], sizes = [1, 16, 128], strides = [1, 1, 1]} : vector<3x16x128xf32> to vector<1x16x128xf32>
    %455 = vector.shape_cast %454 : vector<1x16x128xf32> to vector<16x128xf32>
    %456 = vector.broadcast %453 : vector<1x128xf32> to vector<16x128xf32>
    %457 = arith.subf %456, %455 : vector<16x128xf32>
    %458 = arith.mulf %457, %457 : vector<16x128xf32>
    %459 = arith.addf %451, %458 : vector<16x128xf32>
    %c2_231 = arith.constant 2 : index
    %c6_232 = arith.constant 6 : index
    %c0_233 = arith.constant 0 : index
    %460 = vector.load %arg1[%c2_231, %c6_232, %c0_233] : memref<3x8x128xf32, #tpu.memory_space<vmem>>, vector<1x1x128xf32>
    %461 = vector.shape_cast %460 : vector<1x1x128xf32> to vector<1x128xf32>
    %462 = vector.extract_strided_slice %2 {offsets = [2, 0, 0], sizes = [1, 16, 128], strides = [1, 1, 1]} : vector<3x16x128xf32> to vector<1x16x128xf32>
    %463 = vector.shape_cast %462 : vector<1x16x128xf32> to vector<16x128xf32>
    %464 = vector.broadcast %461 : vector<1x128xf32> to vector<16x128xf32>
    %465 = arith.subf %464, %463 : vector<16x128xf32>
    %466 = arith.mulf %465, %465 : vector<16x128xf32>
    %467 = arith.addf %459, %466 : vector<16x128xf32>
    %468 = math.sqrt %467 : vector<16x128xf32>
    %cst_234 = arith.constant 0.833333313 : f32
    %469 = vector.broadcast %cst_234 : f32 to vector<16x128xf32>
    %470 = arith.mulf %468, %469 : vector<16x128xf32>
    %cst_235 = arith.constant 1.000000e+00 : f32
    %471 = vector.broadcast %cst_235 : f32 to vector<16x128xf32>
    %472 = arith.subf %471, %470 : vector<16x128xf32>
    %cst_236 = arith.constant 0.000000e+00 : f32
    %473 = vector.broadcast %cst_236 : f32 to vector<16x128xf32>
    %474 = arith.maximumf %472, %473 : vector<16x128xf32>
    %c0_237 = arith.constant 0 : index
    %c6_238 = arith.constant 6 : index
    %c0_239 = arith.constant 0 : index
    %475 = vector.load %arg2[%c0_237, %c6_238, %c0_239] : memref<8x8x128xf32, #tpu.memory_space<vmem>>, vector<1x1x128xf32>
    %476 = vector.shape_cast %475 : vector<1x1x128xf32> to vector<1x128xf32>
    %477 = vector.broadcast %476 : vector<1x128xf32> to vector<16x128xf32>
    %478 = arith.mulf %474, %477 : vector<16x128xf32>
    %479 = arith.addf %407, %478 : vector<16x128xf32>
    %c1_240 = arith.constant 1 : index
    %c6_241 = arith.constant 6 : index
    %c0_242 = arith.constant 0 : index
    %480 = vector.load %arg2[%c1_240, %c6_241, %c0_242] : memref<8x8x128xf32, #tpu.memory_space<vmem>>, vector<1x1x128xf32>
    %481 = vector.shape_cast %480 : vector<1x1x128xf32> to vector<1x128xf32>
    %482 = vector.broadcast %481 : vector<1x128xf32> to vector<16x128xf32>
    %483 = arith.mulf %474, %482 : vector<16x128xf32>
    %484 = arith.addf %412, %483 : vector<16x128xf32>
    %c2_243 = arith.constant 2 : index
    %c6_244 = arith.constant 6 : index
    %c0_245 = arith.constant 0 : index
    %485 = vector.load %arg2[%c2_243, %c6_244, %c0_245] : memref<8x8x128xf32, #tpu.memory_space<vmem>>, vector<1x1x128xf32>
    %486 = vector.shape_cast %485 : vector<1x1x128xf32> to vector<1x128xf32>
    %487 = vector.broadcast %486 : vector<1x128xf32> to vector<16x128xf32>
    %488 = arith.mulf %474, %487 : vector<16x128xf32>
    %489 = arith.addf %417, %488 : vector<16x128xf32>
    %c3_246 = arith.constant 3 : index
    %c6_247 = arith.constant 6 : index
    %c0_248 = arith.constant 0 : index
    %490 = vector.load %arg2[%c3_246, %c6_247, %c0_248] : memref<8x8x128xf32, #tpu.memory_space<vmem>>, vector<1x1x128xf32>
    %491 = vector.shape_cast %490 : vector<1x1x128xf32> to vector<1x128xf32>
    %492 = vector.broadcast %491 : vector<1x128xf32> to vector<16x128xf32>
    %493 = arith.mulf %474, %492 : vector<16x128xf32>
    %494 = arith.addf %422, %493 : vector<16x128xf32>
    %c4_249 = arith.constant 4 : index
    %c6_250 = arith.constant 6 : index
    %c0_251 = arith.constant 0 : index
    %495 = vector.load %arg2[%c4_249, %c6_250, %c0_251] : memref<8x8x128xf32, #tpu.memory_space<vmem>>, vector<1x1x128xf32>
    %496 = vector.shape_cast %495 : vector<1x1x128xf32> to vector<1x128xf32>
    %497 = vector.broadcast %496 : vector<1x128xf32> to vector<16x128xf32>
    %498 = arith.mulf %474, %497 : vector<16x128xf32>
    %499 = arith.addf %427, %498 : vector<16x128xf32>
    %c5_252 = arith.constant 5 : index
    %c6_253 = arith.constant 6 : index
    %c0_254 = arith.constant 0 : index
    %500 = vector.load %arg2[%c5_252, %c6_253, %c0_254] : memref<8x8x128xf32, #tpu.memory_space<vmem>>, vector<1x1x128xf32>
    %501 = vector.shape_cast %500 : vector<1x1x128xf32> to vector<1x128xf32>
    %502 = vector.broadcast %501 : vector<1x128xf32> to vector<16x128xf32>
    %503 = arith.mulf %474, %502 : vector<16x128xf32>
    %504 = arith.addf %432, %503 : vector<16x128xf32>
    %c6_255 = arith.constant 6 : index
    %c6_256 = arith.constant 6 : index
    %c0_257 = arith.constant 0 : index
    %505 = vector.load %arg2[%c6_255, %c6_256, %c0_257] : memref<8x8x128xf32, #tpu.memory_space<vmem>>, vector<1x1x128xf32>
    %506 = vector.shape_cast %505 : vector<1x1x128xf32> to vector<1x128xf32>
    %507 = vector.broadcast %506 : vector<1x128xf32> to vector<16x128xf32>
    %508 = arith.mulf %474, %507 : vector<16x128xf32>
    %509 = arith.addf %437, %508 : vector<16x128xf32>
    %c7_258 = arith.constant 7 : index
    %c6_259 = arith.constant 6 : index
    %c0_260 = arith.constant 0 : index
    %510 = vector.load %arg2[%c7_258, %c6_259, %c0_260] : memref<8x8x128xf32, #tpu.memory_space<vmem>>, vector<1x1x128xf32>
    %511 = vector.shape_cast %510 : vector<1x1x128xf32> to vector<1x128xf32>
    %512 = vector.broadcast %511 : vector<1x128xf32> to vector<16x128xf32>
    %513 = arith.mulf %474, %512 : vector<16x128xf32>
    %514 = arith.addf %442, %513 : vector<16x128xf32>
    %cst_261 = arith.constant 0.000000e+00 : f32
    %515 = vector.broadcast %cst_261 : f32 to vector<16x128xf32>
    %c0_262 = arith.constant 0 : index
    %c7_263 = arith.constant 7 : index
    %c0_264 = arith.constant 0 : index
    %516 = vector.load %arg1[%c0_262, %c7_263, %c0_264] : memref<3x8x128xf32, #tpu.memory_space<vmem>>, vector<1x1x128xf32>
    %517 = vector.shape_cast %516 : vector<1x1x128xf32> to vector<1x128xf32>
    %518 = vector.extract_strided_slice %2 {offsets = [0, 0, 0], sizes = [1, 16, 128], strides = [1, 1, 1]} : vector<3x16x128xf32> to vector<1x16x128xf32>
    %519 = vector.shape_cast %518 : vector<1x16x128xf32> to vector<16x128xf32>
    %520 = vector.broadcast %517 : vector<1x128xf32> to vector<16x128xf32>
    %521 = arith.subf %520, %519 : vector<16x128xf32>
    %522 = arith.mulf %521, %521 : vector<16x128xf32>
    %523 = arith.addf %515, %522 : vector<16x128xf32>
    %c1_265 = arith.constant 1 : index
    %c7_266 = arith.constant 7 : index
    %c0_267 = arith.constant 0 : index
    %524 = vector.load %arg1[%c1_265, %c7_266, %c0_267] : memref<3x8x128xf32, #tpu.memory_space<vmem>>, vector<1x1x128xf32>
    %525 = vector.shape_cast %524 : vector<1x1x128xf32> to vector<1x128xf32>
    %526 = vector.extract_strided_slice %2 {offsets = [1, 0, 0], sizes = [1, 16, 128], strides = [1, 1, 1]} : vector<3x16x128xf32> to vector<1x16x128xf32>
    %527 = vector.shape_cast %526 : vector<1x16x128xf32> to vector<16x128xf32>
    %528 = vector.broadcast %525 : vector<1x128xf32> to vector<16x128xf32>
    %529 = arith.subf %528, %527 : vector<16x128xf32>
    %530 = arith.mulf %529, %529 : vector<16x128xf32>
    %531 = arith.addf %523, %530 : vector<16x128xf32>
    %c2_268 = arith.constant 2 : index
    %c7_269 = arith.constant 7 : index
    %c0_270 = arith.constant 0 : index
    %532 = vector.load %arg1[%c2_268, %c7_269, %c0_270] : memref<3x8x128xf32, #tpu.memory_space<vmem>>, vector<1x1x128xf32>
    %533 = vector.shape_cast %532 : vector<1x1x128xf32> to vector<1x128xf32>
    %534 = vector.extract_strided_slice %2 {offsets = [2, 0, 0], sizes = [1, 16, 128], strides = [1, 1, 1]} : vector<3x16x128xf32> to vector<1x16x128xf32>
    %535 = vector.shape_cast %534 : vector<1x16x128xf32> to vector<16x128xf32>
    %536 = vector.broadcast %533 : vector<1x128xf32> to vector<16x128xf32>
    %537 = arith.subf %536, %535 : vector<16x128xf32>
    %538 = arith.mulf %537, %537 : vector<16x128xf32>
    %539 = arith.addf %531, %538 : vector<16x128xf32>
    %540 = math.sqrt %539 : vector<16x128xf32>
    %cst_271 = arith.constant 0.833333313 : f32
    %541 = vector.broadcast %cst_271 : f32 to vector<16x128xf32>
    %542 = arith.mulf %540, %541 : vector<16x128xf32>
    %cst_272 = arith.constant 1.000000e+00 : f32
    %543 = vector.broadcast %cst_272 : f32 to vector<16x128xf32>
    %544 = arith.subf %543, %542 : vector<16x128xf32>
    %cst_273 = arith.constant 0.000000e+00 : f32
    %545 = vector.broadcast %cst_273 : f32 to vector<16x128xf32>
    %546 = arith.maximumf %544, %545 : vector<16x128xf32>
    %c0_274 = arith.constant 0 : index
    %c7_275 = arith.constant 7 : index
    %c0_276 = arith.constant 0 : index
    %547 = vector.load %arg2[%c0_274, %c7_275, %c0_276] : memref<8x8x128xf32, #tpu.memory_space<vmem>>, vector<1x1x128xf32>
    %548 = vector.shape_cast %547 : vector<1x1x128xf32> to vector<1x128xf32>
    %549 = vector.broadcast %548 : vector<1x128xf32> to vector<16x128xf32>
    %550 = arith.mulf %546, %549 : vector<16x128xf32>
    %551 = arith.addf %479, %550 : vector<16x128xf32>
    %c1_277 = arith.constant 1 : index
    %c7_278 = arith.constant 7 : index
    %c0_279 = arith.constant 0 : index
    %552 = vector.load %arg2[%c1_277, %c7_278, %c0_279] : memref<8x8x128xf32, #tpu.memory_space<vmem>>, vector<1x1x128xf32>
    %553 = vector.shape_cast %552 : vector<1x1x128xf32> to vector<1x128xf32>
    %554 = vector.broadcast %553 : vector<1x128xf32> to vector<16x128xf32>
    %555 = arith.mulf %546, %554 : vector<16x128xf32>
    %556 = arith.addf %484, %555 : vector<16x128xf32>
    %c2_280 = arith.constant 2 : index
    %c7_281 = arith.constant 7 : index
    %c0_282 = arith.constant 0 : index
    %557 = vector.load %arg2[%c2_280, %c7_281, %c0_282] : memref<8x8x128xf32, #tpu.memory_space<vmem>>, vector<1x1x128xf32>
    %558 = vector.shape_cast %557 : vector<1x1x128xf32> to vector<1x128xf32>
    %559 = vector.broadcast %558 : vector<1x128xf32> to vector<16x128xf32>
    %560 = arith.mulf %546, %559 : vector<16x128xf32>
    %561 = arith.addf %489, %560 : vector<16x128xf32>
    %c3_283 = arith.constant 3 : index
    %c7_284 = arith.constant 7 : index
    %c0_285 = arith.constant 0 : index
    %562 = vector.load %arg2[%c3_283, %c7_284, %c0_285] : memref<8x8x128xf32, #tpu.memory_space<vmem>>, vector<1x1x128xf32>
    %563 = vector.shape_cast %562 : vector<1x1x128xf32> to vector<1x128xf32>
    %564 = vector.broadcast %563 : vector<1x128xf32> to vector<16x128xf32>
    %565 = arith.mulf %546, %564 : vector<16x128xf32>
    %566 = arith.addf %494, %565 : vector<16x128xf32>
    %c4_286 = arith.constant 4 : index
    %c7_287 = arith.constant 7 : index
    %c0_288 = arith.constant 0 : index
    %567 = vector.load %arg2[%c4_286, %c7_287, %c0_288] : memref<8x8x128xf32, #tpu.memory_space<vmem>>, vector<1x1x128xf32>
    %568 = vector.shape_cast %567 : vector<1x1x128xf32> to vector<1x128xf32>
    %569 = vector.broadcast %568 : vector<1x128xf32> to vector<16x128xf32>
    %570 = arith.mulf %546, %569 : vector<16x128xf32>
    %571 = arith.addf %499, %570 : vector<16x128xf32>
    %c5_289 = arith.constant 5 : index
    %c7_290 = arith.constant 7 : index
    %c0_291 = arith.constant 0 : index
    %572 = vector.load %arg2[%c5_289, %c7_290, %c0_291] : memref<8x8x128xf32, #tpu.memory_space<vmem>>, vector<1x1x128xf32>
    %573 = vector.shape_cast %572 : vector<1x1x128xf32> to vector<1x128xf32>
    %574 = vector.broadcast %573 : vector<1x128xf32> to vector<16x128xf32>
    %575 = arith.mulf %546, %574 : vector<16x128xf32>
    %576 = arith.addf %504, %575 : vector<16x128xf32>
    %c6_292 = arith.constant 6 : index
    %c7_293 = arith.constant 7 : index
    %c0_294 = arith.constant 0 : index
    %577 = vector.load %arg2[%c6_292, %c7_293, %c0_294] : memref<8x8x128xf32, #tpu.memory_space<vmem>>, vector<1x1x128xf32>
    %578 = vector.shape_cast %577 : vector<1x1x128xf32> to vector<1x128xf32>
    %579 = vector.broadcast %578 : vector<1x128xf32> to vector<16x128xf32>
    %580 = arith.mulf %546, %579 : vector<16x128xf32>
    %581 = arith.addf %509, %580 : vector<16x128xf32>
    %c7_295 = arith.constant 7 : index
    %c7_296 = arith.constant 7 : index
    %c0_297 = arith.constant 0 : index
    %582 = vector.load %arg2[%c7_295, %c7_296, %c0_297] : memref<8x8x128xf32, #tpu.memory_space<vmem>>, vector<1x1x128xf32>
    %583 = vector.shape_cast %582 : vector<1x1x128xf32> to vector<1x128xf32>
    %584 = vector.broadcast %583 : vector<1x128xf32> to vector<16x128xf32>
    %585 = arith.mulf %546, %584 : vector<16x128xf32>
    %586 = arith.addf %514, %585 : vector<16x128xf32>
    %587 = tpu.concatenate %551, %556, %561, %566, %571, %576, %581, %586 in 0 : vector<16x128xf32>, vector<16x128xf32>, vector<16x128xf32>, vector<16x128xf32>, vector<16x128xf32>, vector<16x128xf32>, vector<16x128xf32>, vector<16x128xf32> -> vector<128x128xf32>
    %c0_298 = arith.constant 0 : index
    %c0_299 = arith.constant 0 : index
    %588 = vector.load %arg4[%c0_298, %c0_299] : memref<16x128xf32, #tpu.memory_space<vmem>>, vector<16x128xf32>
    %cst_300 = arith.constant dense<0.000000e+00> : vector<16x128xf32>
    %589 = tpu.matmul %588, %587, %cst_300 {dimension_numbers = #tpu.dot_dimension_numbers<[1], [0], [0], [1], [0, 0, 1, 1], [], []>} : vector<16x128xf32>, vector<128x128xf32>, vector<16x128xf32> -> vector<16x128xf32>
    %c0_301 = arith.constant 0 : index
    %c0_302 = arith.constant 0 : index
    %590 = vector.load %arg5[%c0_301, %c0_302] : memref<16x128xf32, #tpu.memory_space<vmem>>, vector<16x128xf32>
    tpu.vector_store %arg5[%c0_301, %c0_302], %589 {strides = array<i32>} : memref<16x128xf32, #tpu.memory_space<vmem>>, vector<16x128xf32>,
    return
  }
  func.func @transform_0(%arg0: i32) -> (i32, i32, i32) {
    %c0_i32 = arith.constant 0 : i32
    %c0_i32_0 = arith.constant 0 : i32
    %c0_i32_1 = arith.constant 0 : i32
    return %c0_i32, %c0_i32_0, %arg0 : i32, i32, i32
  }
  func.func @transform_1(%arg0: i32) -> (i32, i32, i32) {
    %c0_i32 = arith.constant 0 : i32
    %c0_i32_0 = arith.constant 0 : i32
    %c0_i32_1 = arith.constant 0 : i32
    return %c0_i32, %c0_i32_0, %arg0 : i32, i32, i32
  }
  func.func @transform_2(%arg0: i32) -> (i32, i32, i32) {
    %c0_i32 = arith.constant 0 : i32
    %c0_i32_0 = arith.constant 0 : i32
    %c0_i32_1 = arith.constant 0 : i32
    %c0_i32_2 = arith.constant 0 : i32
    return %c0_i32, %c0_i32_0, %c0_i32_1 : i32, i32, i32
  }
  func.func @transform_3(%arg0: i32) -> (i32, i32) {
    %c0_i32 = arith.constant 0 : i32
    %c0_i32_0 = arith.constant 0 : i32
    %c0_i32_1 = arith.constant 0 : i32
    return %c0_i32, %c0_i32_0 : i32, i32
  }
  func.func @transform_4(%arg0: i32) -> (i32, i32) {
    %c0_i32 = arith.constant 0 : i32
    %c0_i32_0 = arith.constant 0 : i32
    return %c0_i32, %arg0 : i32, i32
  }
}

</mosaic_0001>

<llo_original>
// kernel: tpu_custom_call.1
$region0: #{tpu_custom_call.1}
  #allocation0 [shape = 'u32[]', space=smem, size = 0x4, offset = 0x4, fixed_abs, tag = 'smem constant byte address 0x4 - core index']
  #allocation1 [shape = 'u32[144,128]{1,0:T(1,128)}', space=vmem, size = 0x12000, scoped, tag = 'internal scratch']
  %s0 = inlined_call_operand.hbm [shape: f32[3,8,384], index: 0, kind: input, shape index: {}]
  %s1 = inlined_call_operand.hbm [shape: f32[8,8,384], index: 1, kind: input, shape index: {}]
  %s2 = inlined_call_operand.vmem [shape: f32[3,16,1], index: 2, kind: input, shape index: {}]
  %s3 = inlined_call_operand.vmem [shape: f32[16,128], index: 3, kind: input, shape index: {}]
  %s4 = inlined_call_operand.hbm [shape: f32[16,384], index: 4, kind: output, shape index: {}]
  %s5 = sld [smem:[#allocation0]]
  $region57: #{tpu_custom_call.1} parent=0
    _
  %s7 = ssub.s32 1, %s5
  %s8 = scalar_select 0, %s7, %s5
  $region1: #{tpu_custom_call.1} parent=0
    #allocation2 [shape = 'u8[24576]{0}', space=vmem, size = 0x6000, scoped, tag = 'input window, operand 0']
    #allocation3 [shape = 's32[2]{0}', space=sflag, size = 0x8, scoped, tag = 'scoped memory for tpu_custom_call.1']
    #allocation4 [shape = 's32[2]{0}', space=sflag, size = 0x8, scoped, tag = 'scoped memory for tpu_custom_call.1']
    #allocation5 [shape = 'u8[65536]{0}', space=vmem, size = 0x10000, scoped, tag = 'input window, operand 1']
    #allocation6 [shape = 's32[2]{0}', space=sflag, size = 0x8, scoped, tag = 'scoped memory for tpu_custom_call.1']
    #allocation7 [shape = 'u8[16384]{0}', space=vmem, size = 0x4000, scoped, tag = 'output window, operand 0']
    %9 = vsyncpa [#allocation3], 0
    %s10 = scalar_lea.sflag [#allocation3], 1
    %11 = vsyncpa %s10, 0
    %12 = vsyncpa [#allocation6], 0
    %s13 = scalar_lea.sflag [#allocation6], 1
    %14 = vsyncpa %s13, 0
    %15 = vsyncpa [#allocation4], 0
    %s16 = scalar_lea.sflag [#allocation4], 1
    %17 = vsyncpa %s16, 0
    loop: start=0, step=1, limit=5
    $region2: #{tpu_custom_call.1} parent=1 // loop_pre_header
      _
    $region3: #{tpu_custom_call.1} parent=1 // loop_header
      %s19 = sphi 0, %s23
      %p20 = scmp.ge.s32.totalorder %s19, 5
      %s29 = sphi 0, %s31
      %s32 = sphi 0, %s29
      %s33 = sphi 0, %s32
      %s49 = sphi 0, %s33
      %s55 = sphi 0, %s57
      %s58 = sphi 0, %s55
      %s59 = sphi 0, %s58
      %s75 = sphi 0, %s59
      %s79 = sphi 0, %s79
      %s81 = sphi 0, %s79
      %s82 = sphi 0, %s81
      %s96 = sphi 0, %s82
      %s100 = sphi 0, %s100
      %s102 = sphi 0, %s100
      %s103 = sphi 0, %s102
      %s117 = sphi 0, %s103
      %s123 = sphi 0, %s125
      %s126 = sphi 0, %s123
      %s127 = sphi 0, %s126
      %s143 = sphi 0, %s127
    $region4: #{tpu_custom_call.1} parent=1 // loop_header_branch
      %22 = sbr.rel (%p20) target = $region8
    $region5: #{tpu_custom_call.1} parent=1 // loop_body
      %s24 = ssub.s32 %s19, 1
      %s25 = ssub.s32 %s19, 2
      %s26 = sadd.s32 %s19, 1
      %s27 = ssub.s32 %s19, %s26
      %p28 = scmp.eq.s32.totalorder %s27, 0
      %s30 = sadd.s32 %s29, 1
      %s31 = scalar_select %p28, %s29, %s30
      %p34 = pneg %p28
      %p35 = scmp.eq.s32.totalorder %s19, 2
      %p36 = por %p34, %p35
      %p37 = scmp.ne.s32.totalorder %s29, %s32
      %p38 = scmp.eq.s32.totalorder %s19, 0
      %p39 = por %p37, %p38
      %p40 = scmp.ne.s32.totalorder %s29, %s32
      %p41 = scmp.eq.s32.totalorder %s24, 2
      %p42 = por %p40, %p41
      %p43 = scmp.ne.s32.totalorder %s32, %s33
      %p44 = scmp.eq.s32.totalorder %s24, 0
      %p45 = por %p43, %p44
      %p46 = scmp.ne.s32.totalorder %s32, %s33
      %p47 = scmp.eq.s32.totalorder %s25, 2
      %p48 = por %p46, %p47
      %p50 = scmp.ne.s32.totalorder %s33, %s49
      %p51 = scmp.eq.s32.totalorder %s25, 0
      %p52 = por %p50, %p51
      %s53 = ssub.s32 %s19, %s26
      %p54 = scmp.eq.s32.totalorder %s53, 0
      %s56 = sadd.s32 %s55, 1
      %s57 = scalar_select %p54, %s55, %s56
      %p60 = pneg %p54
      %p61 = scmp.eq.s32.totalorder %s19, 2
      %p62 = por %p60, %p61
      %p63 = scmp.ne.s32.totalorder %s55, %s58
      %p64 = scmp.eq.s32.totalorder %s19, 0
      %p65 = por %p63, %p64
      %p66 = scmp.ne.s32.totalorder %s55, %s58
      %p67 = scmp.eq.s32.totalorder %s24, 2
      %p68 = por %p66, %p67
      %p69 = scmp.ne.s32.totalorder %s58, %s59
      %p70 = scmp.eq.s32.totalorder %s24, 0
      %p71 = por %p69, %p70
      %p72 = scmp.ne.s32.totalorder %s58, %s59
      %p73 = scmp.eq.s32.totalorder %s25, 2
      %p74 = por %p72, %p73
      %p76 = scmp.ne.s32.totalorder %s59, %s75
      %p77 = scmp.eq.s32.totalorder %s25, 0
      %p78 = por %p76, %p77
      %s80 = sadd.s32 %s79, 1
      %p83 = scmp.eq.s32.totalorder %s19, 2
      %p84 = scmp.ne.s32.totalorder %s79, %s81
      %p85 = scmp.eq.s32.totalorder %s19, 0
      %p86 = por %p84, %p85
      %p87 = scmp.ne.s32.totalorder %s79, %s81
      %p88 = scmp.eq.s32.totalorder %s24, 2
      %p89 = por %p87, %p88
      %p90 = scmp.ne.s32.totalorder %s81, %s82
      %p91 = scmp.eq.s32.totalorder %s24, 0
      %p92 = por %p90, %p91
      %p93 = scmp.ne.s32.totalorder %s81, %s82
      %p94 = scmp.eq.s32.totalorder %s25, 2
      %p95 = por %p93, %p94
      %p97 = scmp.ne.s32.totalorder %s82, %s96
      %p98 = scmp.eq.s32.totalorder %s25, 0
      %p99 = por %p97, %p98
      %s101 = sadd.s32 %s100, 1
      %p104 = scmp.eq.s32.totalorder %s19, 2
      %p105 = scmp.ne.s32.totalorder %s100, %s102
      %p106 = scmp.eq.s32.totalorder %s19, 0
      %p107 = por %p105, %p106
      %p108 = scmp.ne.s32.totalorder %s100, %s102
      %p109 = scmp.eq.s32.totalorder %s24, 2
      %p110 = por %p108, %p109
      %p111 = scmp.ne.s32.totalorder %s102, %s103
      %p112 = scmp.eq.s32.totalorder %s24, 0
      %p113 = por %p111, %p112
      %p114 = scmp.ne.s32.totalorder %s102, %s103
      %p115 = scmp.eq.s32.totalorder %s25, 2
      %p116 = por %p114, %p115
      %p118 = scmp.ne.s32.totalorder %s103, %s117
      %p119 = scmp.eq.s32.totalorder %s25, 0
      %p120 = por %p118, %p119
      %s121 = ssub.s32 %s19, %s26
      %p122 = scmp.eq.s32.totalorder %s121, 0
      %s124 = sadd.s32 %s123, 1
      %s125 = scalar_select %p122, %s123, %s124
      %p128 = pneg %p122
      %p129 = scmp.eq.s32.totalorder %s19, 2
      %p130 = por %p128, %p129
      %p131 = scmp.ne.s32.totalorder %s123, %s126
      %p132 = scmp.eq.s32.totalorder %s19, 0
      %p133 = por %p131, %p132
      %p134 = scmp.ne.s32.totalorder %s123, %s126
      %p135 = scmp.eq.s32.totalorder %s24, 2
      %p136 = por %p134, %p135
      %p137 = scmp.ne.s32.totalorder %s126, %s127
      %p138 = scmp.eq.s32.totalorder %s24, 0
      %p139 = por %p137, %p138
      %p140 = scmp.ne.s32.totalorder %s126, %s127
      %p141 = scmp.eq.s32.totalorder %s25, 2
      %p142 = por %p140, %p141
      %p144 = scmp.ne.s32.totalorder %s127, %s143
      %p145 = scmp.eq.s32.totalorder %s25, 0
      %p146 = por %p144, %p145
      %p147 = scmp.le.s32.totalorder 1, %s19
      %p148 = scmp.lt.s32.totalorder %s19, 4
      %p149 = pnand %p147, %p148
      %p150 = pneg %p149
      // Predicated region
      $region9: #{tpu_custom_call.1} parent=5 // pred_check
        _
      $region10: #{tpu_custom_call.1} parent=5 // pred_check_branch
        %152 = sbr.rel (%p149) target = $region12
      $region11: #{tpu_custom_call.1} parent=5 // pred_region
        %s153 = ssub.s32 %s19, 1
        // Predicated region
        $region13: #{tpu_custom_call.1} parent=11 // pred_check
          %p154 = pneg %p92
        $region14: #{tpu_custom_call.1} parent=11 // pred_check_branch
          %156 = sbr.rel (%p154) target = $region16
        $region15: #{tpu_custom_call.1} parent=11 // pred_region
          _
        $region16: #{tpu_custom_call.1} parent=11 // pred_fallthru
          _
        // Predicated region
        $region17: #{tpu_custom_call.1} parent=11 // pred_check
          %p157 = pneg %p113
        $region18: #{tpu_custom_call.1} parent=11 // pred_check_branch
          %159 = sbr.rel (%p157) target = $region20
        $region19: #{tpu_custom_call.1} parent=11 // pred_region
          _
        $region20: #{tpu_custom_call.1} parent=11 // pred_fallthru
          _
      $region12: #{tpu_custom_call.1} parent=5 // pred_fallthru
        _
      %p160 = scmp.lt.s32.totalorder %s19, 3
      // Predicated region
      $region21: #{tpu_custom_call.1} parent=5 // pred_check
        %p161 = pneg %p160
      $region22: #{tpu_custom_call.1} parent=5 // pred_check_branch
        %163 = sbr.rel (%p161) target = $region24
      $region23: #{tpu_custom_call.1} parent=5 // pred_region
        // Predicated region
        $region25: #{tpu_custom_call.1} parent=23 // pred_check
          %p164 = pneg %p39
        $region26: #{tpu_custom_call.1} parent=23 // pred_check_branch
          %166 = sbr.rel (%p164) target = $region28
        $region27: #{tpu_custom_call.1} parent=23 // pred_region
          %s167 = sand.u32 %s29, 1
          %s168 = scalar_lea.sflag [#allocation3], %s167
          %s169 = sand.u32 %s29, 1
          %s170 = smul.addr %s169, 24
          %s171 = scalar_lea.vmem [#allocation2], %s170
          %s173 = ssub.s32 384, 384
          %174 = vsyncadd %s168, %s173
          %s175 = smul.addr %s19, 128
          %s176 = scalar_lea.hbm %s0, %s175
          %s177 = sshll.u32 %s171, 4
          %s178 = int_to_ptr.vmem [resolvable:$true] %s177
          %183 = dma.hbm_to_vmem [thread:$0]  %s176, 384, %s178, %s168, 384, 128, 8
        $region28: #{tpu_custom_call.1} parent=23 // pred_fallthru
          _
        // Predicated region
        $region29: #{tpu_custom_call.1} parent=23 // pred_check
          %p184 = pneg %p65
        $region30: #{tpu_custom_call.1} parent=23 // pred_check_branch
          %186 = sbr.rel (%p184) target = $region32
        $region31: #{tpu_custom_call.1} parent=23 // pred_region
          %s187 = sand.u32 %s55, 1
          %s188 = scalar_lea.sflag [#allocation6], %s187
          %s189 = sand.u32 %s55, 1
          %s190 = smul.addr %s189, 64
          %s191 = scalar_lea.vmem [#allocation5], %s190
          %s193 = ssub.s32 1024, 1024
          %194 = vsyncadd %s188, %s193
          %s195 = smul.addr %s19, 128
          %s196 = scalar_lea.hbm %s1, %s195
          %s197 = sshll.u32 %s191, 4
          %s198 = int_to_ptr.vmem [resolvable:$true] %s197
          %203 = dma.hbm_to_vmem [thread:$0]  %s196, 1024, %s198, %s188, 384, 128, 8
        $region32: #{tpu_custom_call.1} parent=23 // pred_fallthru
          _
      $region24: #{tpu_custom_call.1} parent=5 // pred_fallthru
        _
      %p204 = scmp.le.s32.totalorder 1, %s19
      %p205 = scmp.lt.s32.totalorder %s19, 4
      %p206 = pnand %p204, %p205
      %p207 = pneg %p206
      // Predicated region
      $region33: #{tpu_custom_call.1} parent=5 // pred_check
        _
      $region34: #{tpu_custom_call.1} parent=5 // pred_check_branch
        %209 = sbr.rel (%p206) target = $region36
      $region35: #{tpu_custom_call.1} parent=5 // pred_region
        %s210 = ssub.s32 %s19, 1
        %s211 = sand.u32 %s32, 1
        %s212 = scalar_lea.sflag [#allocation3], %s211
        %s213 = sand.u32 %s32, 1
        %s214 = smul.addr %s213, 24
        %s215 = scalar_lea.vmem [#allocation2], %s214
        // Predicated region
        $region37: #{tpu_custom_call.1} parent=35 // pred_check
          %p216 = pneg %p45
        $region38: #{tpu_custom_call.1} parent=35 // pred_check_branch
          %218 = sbr.rel (%p216) target = $region40
        $region39: #{tpu_custom_call.1} parent=35 // pred_region
          %219 = dma.done %s212, 384
        $region40: #{tpu_custom_call.1} parent=35 // pred_fallthru
          _
        %s220 = sand.u32 %s58, 1
        %s221 = scalar_lea.sflag [#allocation6], %s220
        %s222 = sand.u32 %s58, 1
        %s223 = smul.addr %s222, 64
        %s224 = scalar_lea.vmem [#allocation5], %s223
        // Predicated region
        $region41: #{tpu_custom_call.1} parent=35 // pred_check
          %p225 = pneg %p71
        $region42: #{tpu_custom_call.1} parent=35 // pred_check_branch
          %227 = sbr.rel (%p225) target = $region44
        $region43: #{tpu_custom_call.1} parent=35 // pred_region
          %228 = dma.done %s221, 1024
        $region44: #{tpu_custom_call.1} parent=35 // pred_fallthru
          _
        %s229 = sand.u32 %s32, 1
        %s230 = scalar_lea.sflag [#allocation3], %s229
        %s231 = sand.u32 %s32, 1
        %s232 = smul.addr %s231, 24
        %s233 = scalar_lea.vmem [#allocation2], %s232
        %p234 = pneg %p45
        %p235 = pneg %p42
        %s236 = sand.u32 %s58, 1
        %s237 = scalar_lea.sflag [#allocation6], %s236
        %s238 = sand.u32 %s58, 1
        %s239 = smul.addr %s238, 64
        %s240 = scalar_lea.vmem [#allocation5], %s239
        %p241 = pneg %p71
        %p242 = pneg %p68
        %p243 = pneg %p92
        %p244 = pneg %p89
        %p245 = pneg %p113
        %p246 = pneg %p110
        %p247 = pneg %p139
        %p248 = pneg %p136
        %s249 = sand.u32 %s126, 1
        %s250 = scalar_lea.sflag [#allocation4], %s249
        %s251 = sand.u32 %s126, 1
        %s252 = smul.addr %s251, 16
        %s253 = scalar_lea.vmem [#allocation7], %s252
        %v254 = vld [vmem:[%s2] sm:$0xff]
        %v255 = vld [vmem:[%s2 + $0x8] sm:$0xff]
        %v256 = vld [vmem:[%s2 + $0x10] sm:$0xff]
        %v257 = vld [vmem:[%s2 + $0x18] sm:$0xff]
        %v258 = vld [vmem:[%s2 + $0x20] sm:$0xff]
        %v259 = vld [vmem:[%s2 + $0x28] sm:$0xff]
        %v260 = vld [vmem:[%s215] sm:$0x1]
        %262 = vset.pattern.permute.xlu0 0
        %263 = vperm.xlu0 %262, %v254
        %v264 = vpop.permute.xlu0 %263
        %267 = vset.pattern.permute.xlu0 0
        %268 = vperm.xlu0 %267, %v255
        %v269 = vpop.permute.xlu0 %268
        %v271 = vlaneseq
        %v272 = vshrl.u32 %v271, 7
        %v273 = vsub.s32 0, %v272
        %v274 = vrot.slane %v260, %v273
        %v275 = vsub.f32 %v274, %v264
        %v276 = vsub.f32 %v274, %v269
        %v277 = vmul.f32 %v275, %v275
        %v278 = vmul.f32 %v276, %v276
        %v279 = vadd.f32 %v277, 0.0
        %v280 = vadd.f32 %v278, 0.0
        %s281 = scalar_lea.vmem %s215, 8 [#allocation2]
        %v282 = vld [vmem:[%s281] sm:$0x1]
        %284 = vset.pattern.permute.xlu0 0
        %285 = vperm.xlu0 %284, %v256
        %v286 = vpop.permute.xlu0 %285
        %289 = vset.pattern.permute.xlu0 0
        %290 = vperm.xlu0 %289, %v257
        %v291 = vpop.permute.xlu0 %290
        %v293 = vlaneseq
        %v294 = vshrl.u32 %v293, 7
        %v295 = vsub.s32 0, %v294
        %v296 = vrot.slane %v282, %v295
        %v297 = vsub.f32 %v296, %v286
        %v298 = vsub.f32 %v296, %v291
        %v299 = vmul.f32 %v297, %v297
        %v300 = vmul.f32 %v298, %v298
        %v301 = vadd.f32 %v279, %v299
        %v302 = vadd.f32 %v280, %v300
        %s303 = scalar_lea.vmem %s215, 16 [#allocation2]
        %v304 = vld [vmem:[%s303] sm:$0x1]
        %306 = vset.pattern.permute.xlu0 0
        %307 = vperm.xlu0 %306, %v258
        %v308 = vpop.permute.xlu0 %307
        %311 = vset.pattern.permute.xlu0 0
        %312 = vperm.xlu0 %311, %v259
        %v313 = vpop.permute.xlu0 %312
        %v315 = vlaneseq
        %v316 = vshrl.u32 %v315, 7
        %v317 = vsub.s32 0, %v316
        %v318 = vrot.slane %v304, %v317
        %v319 = vsub.f32 %v318, %v308
        %v320 = vsub.f32 %v318, %v313
        %v321 = vmul.f32 %v319, %v319
        %v322 = vmul.f32 %v320, %v320
        %v323 = vadd.f32 %v301, %v321
        %v324 = vadd.f32 %v302, %v322
        %v325 = vrsqrt.pop %v323
        %v326 = vmul.f32 %v323, %v325
        %vm327 = vcmp.eq.f32.partialorder %v323, inf
        %v328 = vsel %vm327, %v323, %v326
        %vm329 = vcmp.eq.f32.partialorder %v323, 0.0
        %v330 = vand.u32 %v323, 2147483648
        %v331 = vsel %vm329, %v330, %v328
        %v332 = vrsqrt.pop %v324
        %v333 = vmul.f32 %v324, %v332
        %vm334 = vcmp.eq.f32.partialorder %v324, inf
        %v335 = vsel %vm334, %v324, %v333
        %vm336 = vcmp.eq.f32.partialorder %v324, 0.0
        %v337 = vand.u32 %v324, 2147483648
        %v338 = vsel %vm336, %v337, %v335
        %v339 = vmul.f32 %v331, 0.8333333
        %v340 = vmul.f32 %v338, 0.8333333
        %v341 = vsub.f32 1.0, %v339
        %v342 = vsub.f32 1.0, %v340
        %v343 = vmax.f32 %v341, 0.0
        %v344 = vmax.f32 %v342, 0.0
        %v345 = vld [vmem:[%s224] sm:$0x1]
        %v346 = vlaneseq
        %v347 = vshrl.u32 %v346, 7
        %v348 = vsub.s32 0, %v347
        %v349 = vrot.slane %v345, %v348
        %v350 = vmul.f32 %v343, %v349
        %v351 = vmul.f32 %v344, %v349
        %v352 = vadd.f32 %v350, 0.0
        %v353 = vadd.f32 %v351, 0.0
        %s354 = scalar_lea.vmem %s224, 8 [#allocation5]
        %v355 = vld [vmem:[%s354] sm:$0x1]
        %v356 = vlaneseq
        %v357 = vshrl.u32 %v356, 7
        %v358 = vsub.s32 0, %v357
        %v359 = vrot.slane %v355, %v358
        %v360 = vmul.f32 %v343, %v359
        %v361 = vmul.f32 %v344, %v359
        %v362 = vadd.f32 %v360, 0.0
        %v363 = vadd.f32 %v361, 0.0
        %s364 = scalar_lea.vmem %s224, 16 [#allocation5]
        %v365 = vld [vmem:[%s364] sm:$0x1]
        %v366 = vlaneseq
        %v367 = vshrl.u32 %v366, 7
        %v368 = vsub.s32 0, %v367
        %v369 = vrot.slane %v365, %v368
        %v370 = vmul.f32 %v343, %v369
        %v371 = vmul.f32 %v344, %v369
        %v372 = vadd.f32 %v370, 0.0
        %v373 = vadd.f32 %v371, 0.0
        %s374 = scalar_lea.vmem %s224, 24 [#allocation5]
        %v375 = vld [vmem:[%s374] sm:$0x1]
        %v376 = vlaneseq
        %v377 = vshrl.u32 %v376, 7
        %v378 = vsub.s32 0, %v377
        %v379 = vrot.slane %v375, %v378
        %v380 = vmul.f32 %v343, %v379
        %v381 = vmul.f32 %v344, %v379
        %v382 = vadd.f32 %v380, 0.0
        %v383 = vadd.f32 %v381, 0.0
        %s384 = scalar_lea.vmem %s224, 32 [#allocation5]
        %v385 = vld [vmem:[%s384] sm:$0x1]
        %v386 = vlaneseq
        %v387 = vshrl.u32 %v386, 7
        %v388 = vsub.s32 0, %v387
        %v389 = vrot.slane %v385, %v388
        %v390 = vmul.f32 %v343, %v389
        %v391 = vmul.f32 %v344, %v389
        %v392 = vadd.f32 %v390, 0.0
        %v393 = vadd.f32 %v391, 0.0
        %s394 = scalar_lea.vmem %s224, 40 [#allocation5]
        %v395 = vld [vmem:[%s394] sm:$0x1]
        %v396 = vlaneseq
        %v397 = vshrl.u32 %v396, 7
        %v398 = vsub.s32 0, %v397
        %v399 = vrot.slane %v395, %v398
        %v400 = vmul.f32 %v343, %v399
        %v401 = vmul.f32 %v344, %v399
        %v402 = vadd.f32 %v400, 0.0
        %v403 = vadd.f32 %v401, 0.0
        %s404 = scalar_lea.vmem %s224, 48 [#allocation5]
        %v405 = vld [vmem:[%s404] sm:$0x1]
        %v406 = vlaneseq
        %v407 = vshrl.u32 %v406, 7
        %v408 = vsub.s32 0, %v407
        %v409 = vrot.slane %v405, %v408
        %v410 = vmul.f32 %v343, %v409
        %v411 = vmul.f32 %v344, %v409
        %v412 = vadd.f32 %v410, 0.0
        %v413 = vadd.f32 %v411, 0.0
        %s414 = scalar_lea.vmem %s224, 56 [#allocation5]
        %v415 = vld [vmem:[%s414] sm:$0x1]
        %v416 = vlaneseq
        %v417 = vshrl.u32 %v416, 7
        %v418 = vsub.s32 0, %v417
        %v419 = vrot.slane %v415, %v418
        %v420 = vmul.f32 %v343, %v419
        %v421 = vmul.f32 %v344, %v419
        %v422 = vadd.f32 %v420, 0.0
        %v423 = vadd.f32 %v421, 0.0
        %v424 = vld [vmem:[%s215 + $0x1] sm:$0x1]
        %v425 = vlaneseq
        %v426 = vshrl.u32 %v425, 7
        %v427 = vsub.s32 0, %v426
        %v428 = vrot.slane %v424, %v427
        %v429 = vsub.f32 %v428, %v264
        %v430 = vsub.f32 %v428, %v269
        %v431 = vmul.f32 %v429, %v429
        %v432 = vmul.f32 %v430, %v430
        %v433 = vadd.f32 %v431, 0.0
        %v434 = vadd.f32 %v432, 0.0
        %v435 = vld [vmem:[%s281 + $0x1] sm:$0x1]
        %v436 = vlaneseq
        %v437 = vshrl.u32 %v436, 7
        %v438 = vsub.s32 0, %v437
        %v439 = vrot.slane %v435, %v438
        %v440 = vsub.f32 %v439, %v286
        %v441 = vsub.f32 %v439, %v291
        %v442 = vmul.f32 %v440, %v440
        %v443 = vmul.f32 %v441, %v441
        %v444 = vadd.f32 %v433, %v442
        %v445 = vadd.f32 %v434, %v443
        %v446 = vld [vmem:[%s303 + $0x1] sm:$0x1]
        %v447 = vlaneseq
        %v448 = vshrl.u32 %v447, 7
        %v449 = vsub.s32 0, %v448
        %v450 = vrot.slane %v446, %v449
        %v451 = vsub.f32 %v450, %v308
        %v452 = vsub.f32 %v450, %v313
        %v453 = vmul.f32 %v451, %v451
        %v454 = vmul.f32 %v452, %v452
        %v455 = vadd.f32 %v444, %v453
        %v456 = vadd.f32 %v445, %v454
        %v457 = vrsqrt.pop %v455
        %v458 = vmul.f32 %v455, %v457
        %vm459 = vcmp.eq.f32.partialorder %v455, inf
        %v460 = vsel %vm459, %v455, %v458
        %vm461 = vcmp.eq.f32.partialorder %v455, 0.0
        %v462 = vand.u32 %v455, 2147483648
        %v463 = vsel %vm461, %v462, %v460
        %v464 = vrsqrt.pop %v456
        %v465 = vmul.f32 %v456, %v464
        %vm466 = vcmp.eq.f32.partialorder %v456, inf
        %v467 = vsel %vm466, %v456, %v465
        %vm468 = vcmp.eq.f32.partialorder %v456, 0.0
        %v469 = vand.u32 %v456, 2147483648
        %v470 = vsel %vm468, %v469, %v467
        %v471 = vmul.f32 %v463, 0.8333333
        %v472 = vmul.f32 %v470, 0.8333333
        %v473 = vsub.f32 1.0, %v471
        %v474 = vsub.f32 1.0, %v472
        %v475 = vmax.f32 %v473, 0.0
        %v476 = vmax.f32 %v474, 0.0
        %v477 = vld [vmem:[%s224 + $0x1] sm:$0x1]
        %v478 = vlaneseq
        %v479 = vshrl.u32 %v478, 7
        %v480 = vsub.s32 0, %v479
        %v481 = vrot.slane %v477, %v480
        %v482 = vmul.f32 %v475, %v481
        %v483 = vmul.f32 %v476, %v481
        %v484 = vadd.f32 %v352, %v482
        %v485 = vadd.f32 %v353, %v483
        %v486 = vld [vmem:[%s354 + $0x1] sm:$0x1]
        %v487 = vlaneseq
        %v488 = vshrl.u32 %v487, 7
        %v489 = vsub.s32 0, %v488
        %v490 = vrot.slane %v486, %v489
        %v491 = vmul.f32 %v475, %v490
        %v492 = vmul.f32 %v476, %v490
        %v493 = vadd.f32 %v362, %v491
        %v494 = vadd.f32 %v363, %v492
        %v495 = vld [vmem:[%s364 + $0x1] sm:$0x1]
        %v496 = vlaneseq
        %v497 = vshrl.u32 %v496, 7
        %v498 = vsub.s32 0, %v497
        %v499 = vrot.slane %v495, %v498
        %v500 = vmul.f32 %v475, %v499
        %v501 = vmul.f32 %v476, %v499
        %v502 = vadd.f32 %v372, %v500
        %v503 = vadd.f32 %v373, %v501
        %v504 = vld [vmem:[%s374 + $0x1] sm:$0x1]
        %v505 = vlaneseq
        %v506 = vshrl.u32 %v505, 7
        %v507 = vsub.s32 0, %v506
        %v508 = vrot.slane %v504, %v507
        %v509 = vmul.f32 %v475, %v508
        %v510 = vmul.f32 %v476, %v508
        %v511 = vadd.f32 %v382, %v509
        %v512 = vadd.f32 %v383, %v510
        %v513 = vld [vmem:[%s384 + $0x1] sm:$0x1]
        %v514 = vlaneseq
        %v515 = vshrl.u32 %v514, 7
        %v516 = vsub.s32 0, %v515
        %v517 = vrot.slane %v513, %v516
        %v518 = vmul.f32 %v475, %v517
        %v519 = vmul.f32 %v476, %v517
        %v520 = vadd.f32 %v392, %v518
        %v521 = vadd.f32 %v393, %v519
        %v522 = vld [vmem:[%s394 + $0x1] sm:$0x1]
        %v523 = vlaneseq
        %v524 = vshrl.u32 %v523, 7
        %v525 = vsub.s32 0, %v524
        %v526 = vrot.slane %v522, %v525
        %v527 = vmul.f32 %v475, %v526
        %v528 = vmul.f32 %v476, %v526
        %v529 = vadd.f32 %v402, %v527
        %v530 = vadd.f32 %v403, %v528
        %v531 = vld [vmem:[%s404 + $0x1] sm:$0x1]
        %v532 = vlaneseq
        %v533 = vshrl.u32 %v532, 7
        %v534 = vsub.s32 0, %v533
        %v535 = vrot.slane %v531, %v534
        %v536 = vmul.f32 %v475, %v535
        %v537 = vmul.f32 %v476, %v535
        %v538 = vadd.f32 %v412, %v536
        %v539 = vadd.f32 %v413, %v537
        %v540 = vld [vmem:[%s414 + $0x1] sm:$0x1]
        %v541 = vlaneseq
        %v542 = vshrl.u32 %v541, 7
        %v543 = vsub.s32 0, %v542
        %v544 = vrot.slane %v540, %v543
        %v545 = vmul.f32 %v475, %v544
        %v546 = vmul.f32 %v476, %v544
        %v547 = vadd.f32 %v422, %v545
        %v548 = vadd.f32 %v423, %v546
        %v549 = vld [vmem:[%s215 + $0x2] sm:$0x1]
        %v550 = vlaneseq
        %v551 = vshrl.u32 %v550, 7
        %v552 = vsub.s32 0, %v551
        %v553 = vrot.slane %v549, %v552
        %v554 = vsub.f32 %v553, %v264
        %v555 = vsub.f32 %v553, %v269
        %v556 = vmul.f32 %v554, %v554
        %v557 = vmul.f32 %v555, %v555
        %v558 = vadd.f32 %v556, 0.0
        %v559 = vadd.f32 %v557, 0.0
        %v560 = vld [vmem:[%s281 + $0x2] sm:$0x1]
        %v561 = vlaneseq
        %v562 = vshrl.u32 %v561, 7
        %v563 = vsub.s32 0, %v562
        %v564 = vrot.slane %v560, %v563
        %v565 = vsub.f32 %v564, %v286
        %v566 = vsub.f32 %v564, %v291
        %v567 = vmul.f32 %v565, %v565
        %v568 = vmul.f32 %v566, %v566
        %v569 = vadd.f32 %v558, %v567
        %v570 = vadd.f32 %v559, %v568
        %v571 = vld [vmem:[%s303 + $0x2] sm:$0x1]
        %v572 = vlaneseq
        %v573 = vshrl.u32 %v572, 7
        %v574 = vsub.s32 0, %v573
        %v575 = vrot.slane %v571, %v574
        %v576 = vsub.f32 %v575, %v308
        %v577 = vsub.f32 %v575, %v313
        %v578 = vmul.f32 %v576, %v576
        %v579 = vmul.f32 %v577, %v577
        %v580 = vadd.f32 %v569, %v578
        %v581 = vadd.f32 %v570, %v579
        %v582 = vrsqrt.pop %v580
        %v583 = vmul.f32 %v580, %v582
        %vm584 = vcmp.eq.f32.partialorder %v580, inf
        %v585 = vsel %vm584, %v580, %v583
        %vm586 = vcmp.eq.f32.partialorder %v580, 0.0
        %v587 = vand.u32 %v580, 2147483648
        %v588 = vsel %vm586, %v587, %v585
        %v589 = vrsqrt.pop %v581
        %v590 = vmul.f32 %v581, %v589
        %vm591 = vcmp.eq.f32.partialorder %v581, inf
        %v592 = vsel %vm591, %v581, %v590
        %vm593 = vcmp.eq.f32.partialorder %v581, 0.0
        %v594 = vand.u32 %v581, 2147483648
        %v595 = vsel %vm593, %v594, %v592
        %v596 = vmul.f32 %v588, 0.8333333
        %v597 = vmul.f32 %v595, 0.8333333
        %v598 = vsub.f32 1.0, %v596
        %v599 = vsub.f32 1.0, %v597
        %v600 = vmax.f32 %v598, 0.0
        %v601 = vmax.f32 %v599, 0.0
        %v602 = vld [vmem:[%s224 + $0x2] sm:$0x1]
        %v603 = vlaneseq
        %v604 = vshrl.u32 %v603, 7
        %v605 = vsub.s32 0, %v604
        %v606 = vrot.slane %v602, %v605
        %v607 = vmul.f32 %v600, %v606
        %v608 = vmul.f32 %v601, %v606
        %v609 = vadd.f32 %v484, %v607
        %v610 = vadd.f32 %v485, %v608
        %v611 = vld [vmem:[%s354 + $0x2] sm:$0x1]
        %v612 = vlaneseq
        %v613 = vshrl.u32 %v612, 7
        %v614 = vsub.s32 0, %v613
        %v615 = vrot.slane %v611, %v614
        %v616 = vmul.f32 %v600, %v615
        %v617 = vmul.f32 %v601, %v615
        %v618 = vadd.f32 %v493, %v616
        %v619 = vadd.f32 %v494, %v617
        %v620 = vld [vmem:[%s364 + $0x2] sm:$0x1]
        %v621 = vlaneseq
        %v622 = vshrl.u32 %v621, 7
        %v623 = vsub.s32 0, %v622
        %v624 = vrot.slane %v620, %v623
        %v625 = vmul.f32 %v600, %v624
        %v626 = vmul.f32 %v601, %v624
        %v627 = vadd.f32 %v502, %v625
        %v628 = vadd.f32 %v503, %v626
        %v629 = vld [vmem:[%s374 + $0x2] sm:$0x1]
        %v630 = vlaneseq
        %v631 = vshrl.u32 %v630, 7
        %v632 = vsub.s32 0, %v631
        %v633 = vrot.slane %v629, %v632
        %v634 = vmul.f32 %v600, %v633
        %v635 = vmul.f32 %v601, %v633
        %v636 = vadd.f32 %v511, %v634
        %v637 = vadd.f32 %v512, %v635
        %v638 = vld [vmem:[%s384 + $0x2] sm:$0x1]
        %v639 = vlaneseq
        %v640 = vshrl.u32 %v639, 7
        %v641 = vsub.s32 0, %v640
        %v642 = vrot.slane %v638, %v641
        %v643 = vmul.f32 %v600, %v642
        %v644 = vmul.f32 %v601, %v642
        %v645 = vadd.f32 %v520, %v643
        %v646 = vadd.f32 %v521, %v644
        %v647 = vld [vmem:[%s394 + $0x2] sm:$0x1]
        %v648 = vlaneseq
        %v649 = vshrl.u32 %v648, 7
        %v650 = vsub.s32 0, %v649
        %v651 = vrot.slane %v647, %v650
        %v652 = vmul.f32 %v600, %v651
        %v653 = vmul.f32 %v601, %v651
        %v654 = vadd.f32 %v529, %v652
        %v655 = vadd.f32 %v530, %v653
        %v656 = vld [vmem:[%s404 + $0x2] sm:$0x1]
        %v657 = vlaneseq
        %v658 = vshrl.u32 %v657, 7
        %v659 = vsub.s32 0, %v658
        %v660 = vrot.slane %v656, %v659
        %v661 = vmul.f32 %v600, %v660
        %v662 = vmul.f32 %v601, %v660
        %v663 = vadd.f32 %v538, %v661
        %v664 = vadd.f32 %v539, %v662
        %v665 = vld [vmem:[%s414 + $0x2] sm:$0x1]
        %v666 = vlaneseq
        %v667 = vshrl.u32 %v666, 7
        %v668 = vsub.s32 0, %v667
        %v669 = vrot.slane %v665, %v668
        %v670 = vmul.f32 %v600, %v669
        %v671 = vmul.f32 %v601, %v669
        %v672 = vadd.f32 %v547, %v670
        %v673 = vadd.f32 %v548, %v671
        %v674 = vld [vmem:[%s215 + $0x3] sm:$0x1]
        %v675 = vlaneseq
        %v676 = vshrl.u32 %v675, 7
        %v677 = vsub.s32 0, %v676
        %v678 = vrot.slane %v674, %v677
        %v679 = vsub.f32 %v678, %v264
        %v680 = vsub.f32 %v678, %v269
        %v681 = vmul.f32 %v679, %v679
        %v682 = vmul.f32 %v680, %v680
        %v683 = vadd.f32 %v681, 0.0
        %v684 = vadd.f32 %v682, 0.0
        %v685 = vld [vmem:[%s281 + $0x3] sm:$0x1]
        %v686 = vlaneseq
        %v687 = vshrl.u32 %v686, 7
        %v688 = vsub.s32 0, %v687
        %v689 = vrot.slane %v685, %v688
        %v690 = vsub.f32 %v689, %v286
        %v691 = vsub.f32 %v689, %v291
        %v692 = vmul.f32 %v690, %v690
        %v693 = vmul.f32 %v691, %v691
        %v694 = vadd.f32 %v683, %v692
        %v695 = vadd.f32 %v684, %v693
        %v696 = vld [vmem:[%s303 + $0x3] sm:$0x1]
        %v697 = vlaneseq
        %v698 = vshrl.u32 %v697, 7
        %v699 = vsub.s32 0, %v698
        %v700 = vrot.slane %v696, %v699
        %v701 = vsub.f32 %v700, %v308
        %v702 = vsub.f32 %v700, %v313
        %v703 = vmul.f32 %v701, %v701
        %v704 = vmul.f32 %v702, %v702
        %v705 = vadd.f32 %v694, %v703
        %v706 = vadd.f32 %v695, %v704
        %v707 = vrsqrt.pop %v705
        %v708 = vmul.f32 %v705, %v707
        %vm709 = vcmp.eq.f32.partialorder %v705, inf
        %v710 = vsel %vm709, %v705, %v708
        %vm711 = vcmp.eq.f32.partialorder %v705, 0.0
        %v712 = vand.u32 %v705, 2147483648
        %v713 = vsel %vm711, %v712, %v710
        %v714 = vrsqrt.pop %v706
        %v715 = vmul.f32 %v706, %v714
        %vm716 = vcmp.eq.f32.partialorder %v706, inf
        %v717 = vsel %vm716, %v706, %v715
        %vm718 = vcmp.eq.f32.partialorder %v706, 0.0
        %v719 = vand.u32 %v706, 2147483648
        %v720 = vsel %vm718, %v719, %v717
        %v721 = vmul.f32 %v713, 0.8333333
        %v722 = vmul.f32 %v720, 0.8333333
        %v723 = vsub.f32 1.0, %v721
        %v724 = vsub.f32 1.0, %v722
        %v725 = vmax.f32 %v723, 0.0
        %v726 = vmax.f32 %v724, 0.0
        %v727 = vld [vmem:[%s224 + $0x3] sm:$0x1]
        %v728 = vlaneseq
        %v729 = vshrl.u32 %v728, 7
        %v730 = vsub.s32 0, %v729
        %v731 = vrot.slane %v727, %v730
        %v732 = vmul.f32 %v725, %v731
        %v733 = vmul.f32 %v726, %v731
        %v734 = vadd.f32 %v609, %v732
        %v735 = vadd.f32 %v610, %v733
        %v736 = vld [vmem:[%s354 + $0x3] sm:$0x1]
        %v737 = vlaneseq
        %v738 = vshrl.u32 %v737, 7
        %v739 = vsub.s32 0, %v738
        %v740 = vrot.slane %v736, %v739
        %v741 = vmul.f32 %v725, %v740
        %v742 = vmul.f32 %v726, %v740
        %v743 = vadd.f32 %v618, %v741
        %v744 = vadd.f32 %v619, %v742
        %v745 = vld [vmem:[%s364 + $0x3] sm:$0x1]
        %v746 = vlaneseq
        %v747 = vshrl.u32 %v746, 7
        %v748 = vsub.s32 0, %v747
        %v749 = vrot.slane %v745, %v748
        %v750 = vmul.f32 %v725, %v749
        %v751 = vmul.f32 %v726, %v749
        %v752 = vadd.f32 %v627, %v750
        %v753 = vadd.f32 %v628, %v751
        %v754 = vld [vmem:[%s374 + $0x3] sm:$0x1]
        %v755 = vlaneseq
        %v756 = vshrl.u32 %v755, 7
        %v757 = vsub.s32 0, %v756
        %v758 = vrot.slane %v754, %v757
        %v759 = vmul.f32 %v725, %v758
        %v760 = vmul.f32 %v726, %v758
        %v761 = vadd.f32 %v636, %v759
        %v762 = vadd.f32 %v637, %v760
        %v763 = vld [vmem:[%s384 + $0x3] sm:$0x1]
        %v764 = vlaneseq
        %v765 = vshrl.u32 %v764, 7
        %v766 = vsub.s32 0, %v765
        %v767 = vrot.slane %v763, %v766
        %v768 = vmul.f32 %v725, %v767
        %v769 = vmul.f32 %v726, %v767
        %v770 = vadd.f32 %v645, %v768
        %v771 = vadd.f32 %v646, %v769
        %v772 = vld [vmem:[%s394 + $0x3] sm:$0x1]
        %v773 = vlaneseq
        %v774 = vshrl.u32 %v773, 7
        %v775 = vsub.s32 0, %v774
        %v776 = vrot.slane %v772, %v775
        %v777 = vmul.f32 %v725, %v776
        %v778 = vmul.f32 %v726, %v776
        %v779 = vadd.f32 %v654, %v777
        %v780 = vadd.f32 %v655, %v778
        %v781 = vld [vmem:[%s404 + $0x3] sm:$0x1]
        %v782 = vlaneseq
        %v783 = vshrl.u32 %v782, 7
        %v784 = vsub.s32 0, %v783
        %v785 = vrot.slane %v781, %v784
        %v786 = vmul.f32 %v725, %v785
        %v787 = vmul.f32 %v726, %v785
        %v788 = vadd.f32 %v663, %v786
        %v789 = vadd.f32 %v664, %v787
        %v790 = vld [vmem:[%s414 + $0x3] sm:$0x1]
        %v791 = vlaneseq
        %v792 = vshrl.u32 %v791, 7
        %v793 = vsub.s32 0, %v792
        %v794 = vrot.slane %v790, %v793
        %v795 = vmul.f32 %v725, %v794
        %v796 = vmul.f32 %v726, %v794
        %v797 = vadd.f32 %v672, %v795
        %v798 = vadd.f32 %v673, %v796
        %v799 = vld [vmem:[%s215 + $0x4] sm:$0x1]
        %v800 = vlaneseq
        %v801 = vshrl.u32 %v800, 7
        %v802 = vsub.s32 0, %v801
        %v803 = vrot.slane %v799, %v802
        %v804 = vsub.f32 %v803, %v264
        %v805 = vsub.f32 %v803, %v269
        %v806 = vmul.f32 %v804, %v804
        %v807 = vmul.f32 %v805, %v805
        %v808 = vadd.f32 %v806, 0.0
        %v809 = vadd.f32 %v807, 0.0
        %v810 = vld [vmem:[%s281 + $0x4] sm:$0x1]
        %v811 = vlaneseq
        %v812 = vshrl.u32 %v811, 7
        %v813 = vsub.s32 0, %v812
        %v814 = vrot.slane %v810, %v813
        %v815 = vsub.f32 %v814, %v286
        %v816 = vsub.f32 %v814, %v291
        %v817 = vmul.f32 %v815, %v815
        %v818 = vmul.f32 %v816, %v816
        %v819 = vadd.f32 %v808, %v817
        %v820 = vadd.f32 %v809, %v818
        %v821 = vld [vmem:[%s303 + $0x4] sm:$0x1]
        %v822 = vlaneseq
        %v823 = vshrl.u32 %v822, 7
        %v824 = vsub.s32 0, %v823
        %v825 = vrot.slane %v821, %v824
        %v826 = vsub.f32 %v825, %v308
        %v827 = vsub.f32 %v825, %v313
        %v828 = vmul.f32 %v826, %v826
        %v829 = vmul.f32 %v827, %v827
        %v830 = vadd.f32 %v819, %v828
        %v831 = vadd.f32 %v820, %v829
        %v832 = vrsqrt.pop %v830
        %v833 = vmul.f32 %v830, %v832
        %vm834 = vcmp.eq.f32.partialorder %v830, inf
        %v835 = vsel %vm834, %v830, %v833
        %vm836 = vcmp.eq.f32.partialorder %v830, 0.0
        %v837 = vand.u32 %v830, 2147483648
        %v838 = vsel %vm836, %v837, %v835
        %v839 = vrsqrt.pop %v831
        %v840 = vmul.f32 %v831, %v839
        %vm841 = vcmp.eq.f32.partialorder %v831, inf
        %v842 = vsel %vm841, %v831, %v840
        %vm843 = vcmp.eq.f32.partialorder %v831, 0.0
        %v844 = vand.u32 %v831, 2147483648
        %v845 = vsel %vm843, %v844, %v842
        %v846 = vmul.f32 %v838, 0.8333333
        %v847 = vmul.f32 %v845, 0.8333333
        %v848 = vsub.f32 1.0, %v846
        %v849 = vsub.f32 1.0, %v847
        %v850 = vmax.f32 %v848, 0.0
        %v851 = vmax.f32 %v849, 0.0
        %v852 = vld [vmem:[%s224 + $0x4] sm:$0x1]
        %v853 = vlaneseq
        %v854 = vshrl.u32 %v853, 7
        %v855 = vsub.s32 0, %v854
        %v856 = vrot.slane %v852, %v855
        %v857 = vmul.f32 %v850, %v856
        %v858 = vmul.f32 %v851, %v856
        %v859 = vadd.f32 %v734, %v857
        %v860 = vadd.f32 %v735, %v858
        %v861 = vld [vmem:[%s354 + $0x4] sm:$0x1]
        %v862 = vlaneseq
        %v863 = vshrl.u32 %v862, 7
        %v864 = vsub.s32 0, %v863
        %v865 = vrot.slane %v861, %v864
        %v866 = vmul.f32 %v850, %v865
        %v867 = vmul.f32 %v851, %v865
        %v868 = vadd.f32 %v743, %v866
        %v869 = vadd.f32 %v744, %v867
        %v870 = vld [vmem:[%s364 + $0x4] sm:$0x1]
        %v871 = vlaneseq
        %v872 = vshrl.u32 %v871, 7
        %v873 = vsub.s32 0, %v872
        %v874 = vrot.slane %v870, %v873
        %v875 = vmul.f32 %v850, %v874
        %v876 = vmul.f32 %v851, %v874
        %v877 = vadd.f32 %v752, %v875
        %v878 = vadd.f32 %v753, %v876
        %v879 = vld [vmem:[%s374 + $0x4] sm:$0x1]
        %v880 = vlaneseq
        %v881 = vshrl.u32 %v880, 7
        %v882 = vsub.s32 0, %v881
        %v883 = vrot.slane %v879, %v882
        %v884 = vmul.f32 %v850, %v883
        %v885 = vmul.f32 %v851, %v883
        %v886 = vadd.f32 %v761, %v884
        %v887 = vadd.f32 %v762, %v885
        %v888 = vld [vmem:[%s384 + $0x4] sm:$0x1]
        %v889 = vlaneseq
        %v890 = vshrl.u32 %v889, 7
        %v891 = vsub.s32 0, %v890
        %v892 = vrot.slane %v888, %v891
        %v893 = vmul.f32 %v850, %v892
        %v894 = vmul.f32 %v851, %v892
        %v895 = vadd.f32 %v770, %v893
        %v896 = vadd.f32 %v771, %v894
        %v897 = vld [vmem:[%s394 + $0x4] sm:$0x1]
        %v898 = vlaneseq
        %v899 = vshrl.u32 %v898, 7
        %v900 = vsub.s32 0, %v899
        %v901 = vrot.slane %v897, %v900
        %v902 = vmul.f32 %v850, %v901
        %v903 = vmul.f32 %v851, %v901
        %v904 = vadd.f32 %v779, %v902
        %v905 = vadd.f32 %v780, %v903
        %v906 = vld [vmem:[%s404 + $0x4] sm:$0x1]
        %v907 = vlaneseq
        %v908 = vshrl.u32 %v907, 7
        %v909 = vsub.s32 0, %v908
        %v910 = vrot.slane %v906, %v909
        %v911 = vmul.f32 %v850, %v910
        %v912 = vmul.f32 %v851, %v910
        %v913 = vadd.f32 %v788, %v911
        %v914 = vadd.f32 %v789, %v912
        %v915 = vld [vmem:[%s414 + $0x4] sm:$0x1]
        %v916 = vlaneseq
        %v917 = vshrl.u32 %v916, 7
        %v918 = vsub.s32 0, %v917
        %v919 = vrot.slane %v915, %v918
        %v920 = vmul.f32 %v850, %v919
        %v921 = vmul.f32 %v851, %v919
        %v922 = vadd.f32 %v797, %v920
        %v923 = vadd.f32 %v798, %v921
        %v924 = vld [vmem:[%s215 + $0x5] sm:$0x1]
        %v925 = vlaneseq
        %v926 = vshrl.u32 %v925, 7
        %v927 = vsub.s32 0, %v926
        %v928 = vrot.slane %v924, %v927
        %v929 = vsub.f32 %v928, %v264
        %v930 = vsub.f32 %v928, %v269
        %v931 = vmul.f32 %v929, %v929
        %v932 = vmul.f32 %v930, %v930
        %v933 = vadd.f32 %v931, 0.0
        %v934 = vadd.f32 %v932, 0.0
        %v935 = vld [vmem:[%s281 + $0x5] sm:$0x1]
        %v936 = vlaneseq
        %v937 = vshrl.u32 %v936, 7
        %v938 = vsub.s32 0, %v937
        %v939 = vrot.slane %v935, %v938
        %v940 = vsub.f32 %v939, %v286
        %v941 = vsub.f32 %v939, %v291
        %v942 = vmul.f32 %v940, %v940
        %v943 = vmul.f32 %v941, %v941
        %v944 = vadd.f32 %v933, %v942
        %v945 = vadd.f32 %v934, %v943
        %v946 = vld [vmem:[%s303 + $0x5] sm:$0x1]
        %v947 = vlaneseq
        %v948 = vshrl.u32 %v947, 7
        %v949 = vsub.s32 0, %v948
        %v950 = vrot.slane %v946, %v949
        %v951 = vsub.f32 %v950, %v308
        %v952 = vsub.f32 %v950, %v313
        %v953 = vmul.f32 %v951, %v951
        %v954 = vmul.f32 %v952, %v952
        %v955 = vadd.f32 %v944, %v953
        %v956 = vadd.f32 %v945, %v954
        %v957 = vrsqrt.pop %v955
        %v958 = vmul.f32 %v955, %v957
        %vm959 = vcmp.eq.f32.partialorder %v955, inf
        %v960 = vsel %vm959, %v955, %v958
        %vm961 = vcmp.eq.f32.partialorder %v955, 0.0
        %v962 = vand.u32 %v955, 2147483648
        %v963 = vsel %vm961, %v962, %v960
        %v964 = vrsqrt.pop %v956
        %v965 = vmul.f32 %v956, %v964
        %vm966 = vcmp.eq.f32.partialorder %v956, inf
        %v967 = vsel %vm966, %v956, %v965
        %vm968 = vcmp.eq.f32.partialorder %v956, 0.0
        %v969 = vand.u32 %v956, 2147483648
        %v970 = vsel %vm968, %v969, %v967
        %v971 = vmul.f32 %v963, 0.8333333
        %v972 = vmul.f32 %v970, 0.8333333
        %v973 = vsub.f32 1.0, %v971
        %v974 = vsub.f32 1.0, %v972
        %v975 = vmax.f32 %v973, 0.0
        %v976 = vmax.f32 %v974, 0.0
        %v977 = vld [vmem:[%s224 + $0x5] sm:$0x1]
        %v978 = vlaneseq
        %v979 = vshrl.u32 %v978, 7
        %v980 = vsub.s32 0, %v979
        %v981 = vrot.slane %v977, %v980
        %v982 = vmul.f32 %v975, %v981
        %v983 = vmul.f32 %v976, %v981
        %v984 = vadd.f32 %v859, %v982
        %v985 = vadd.f32 %v860, %v983
        %v986 = vld [vmem:[%s354 + $0x5] sm:$0x1]
        %v987 = vlaneseq
        %v988 = vshrl.u32 %v987, 7
        %v989 = vsub.s32 0, %v988
        %v990 = vrot.slane %v986, %v989
        %v991 = vmul.f32 %v975, %v990
        %v992 = vmul.f32 %v976, %v990
        %v993 = vadd.f32 %v868, %v991
        %v994 = vadd.f32 %v869, %v992
        %v995 = vld [vmem:[%s364 + $0x5] sm:$0x1]
        %v996 = vlaneseq
        %v997 = vshrl.u32 %v996, 7
        %v998 = vsub.s32 0, %v997
        %v999 = vrot.slane %v995, %v998
        %v1000 = vmul.f32 %v975, %v999
        %v1001 = vmul.f32 %v976, %v999
        %v1002 = vadd.f32 %v877, %v1000
        %v1003 = vadd.f32 %v878, %v1001
        %v1004 = vld [vmem:[%s374 + $0x5] sm:$0x1]
        %v1005 = vlaneseq
        %v1006 = vshrl.u32 %v1005, 7
        %v1007 = vsub.s32 0, %v1006
        %v1008 = vrot.slane %v1004, %v1007
        %v1009 = vmul.f32 %v975, %v1008
        %v1010 = vmul.f32 %v976, %v1008
        %v1011 = vadd.f32 %v886, %v1009
        %v1012 = vadd.f32 %v887, %v1010
        %v1013 = vld [vmem:[%s384 + $0x5] sm:$0x1]
        %v1014 = vlaneseq
        %v1015 = vshrl.u32 %v1014, 7
        %v1016 = vsub.s32 0, %v1015
        %v1017 = vrot.slane %v1013, %v1016
        %v1018 = vmul.f32 %v975, %v1017
        %v1019 = vmul.f32 %v976, %v1017
        %v1020 = vadd.f32 %v895, %v1018
        %v1021 = vadd.f32 %v896, %v1019
        %v1022 = vld [vmem:[%s394 + $0x5] sm:$0x1]
        %v1023 = vlaneseq
        %v1024 = vshrl.u32 %v1023, 7
        %v1025 = vsub.s32 0, %v1024
        %v1026 = vrot.slane %v1022, %v1025
        %v1027 = vmul.f32 %v975, %v1026
        %v1028 = vmul.f32 %v976, %v1026
        %v1029 = vadd.f32 %v904, %v1027
        %v1030 = vadd.f32 %v905, %v1028
        %v1031 = vld [vmem:[%s404 + $0x5] sm:$0x1]
        %v1032 = vlaneseq
        %v1033 = vshrl.u32 %v1032, 7
        %v1034 = vsub.s32 0, %v1033
        %v1035 = vrot.slane %v1031, %v1034
        %v1036 = vmul.f32 %v975, %v1035
        %v1037 = vmul.f32 %v976, %v1035
        %v1038 = vadd.f32 %v913, %v1036
        %v1039 = vadd.f32 %v914, %v1037
        %v1040 = vld [vmem:[%s414 + $0x5] sm:$0x1]
        %v1041 = vlaneseq
        %v1042 = vshrl.u32 %v1041, 7
        %v1043 = vsub.s32 0, %v1042
        %v1044 = vrot.slane %v1040, %v1043
        %v1045 = vmul.f32 %v975, %v1044
        %v1046 = vmul.f32 %v976, %v1044
        %v1047 = vadd.f32 %v922, %v1045
        %v1048 = vadd.f32 %v923, %v1046
        %v1049 = vld [vmem:[%s215 + $0x6] sm:$0x1]
        %v1050 = vlaneseq
        %v1051 = vshrl.u32 %v1050, 7
        %v1052 = vsub.s32 0, %v1051
        %v1053 = vrot.slane %v1049, %v1052
        %v1054 = vsub.f32 %v1053, %v264
        %v1055 = vsub.f32 %v1053, %v269
        %v1056 = vmul.f32 %v1054, %v1054
        %v1057 = vmul.f32 %v1055, %v1055
        %v1058 = vadd.f32 %v1056, 0.0
        %v1059 = vadd.f32 %v1057, 0.0
        %v1060 = vld [vmem:[%s281 + $0x6] sm:$0x1]
        %v1061 = vlaneseq
        %v1062 = vshrl.u32 %v1061, 7
        %v1063 = vsub.s32 0, %v1062
        %v1064 = vrot.slane %v1060, %v1063
        %v1065 = vsub.f32 %v1064, %v286
        %v1066 = vsub.f32 %v1064, %v291
        %v1067 = vmul.f32 %v1065, %v1065
        %v1068 = vmul.f32 %v1066, %v1066
        %v1069 = vadd.f32 %v1058, %v1067
        %v1070 = vadd.f32 %v1059, %v1068
        %v1071 = vld [vmem:[%s303 + $0x6] sm:$0x1]
        %v1072 = vlaneseq
        %v1073 = vshrl.u32 %v1072, 7
        %v1074 = vsub.s32 0, %v1073
        %v1075 = vrot.slane %v1071, %v1074
        %v1076 = vsub.f32 %v1075, %v308
        %v1077 = vsub.f32 %v1075, %v313
        %v1078 = vmul.f32 %v1076, %v1076
        %v1079 = vmul.f32 %v1077, %v1077
        %v1080 = vadd.f32 %v1069, %v1078
        %v1081 = vadd.f32 %v1070, %v1079
        %v1082 = vrsqrt.pop %v1080
        %v1083 = vmul.f32 %v1080, %v1082
        %vm1084 = vcmp.eq.f32.partialorder %v1080, inf
        %v1085 = vsel %vm1084, %v1080, %v1083
        %vm1086 = vcmp.eq.f32.partialorder %v1080, 0.0
        %v1087 = vand.u32 %v1080, 2147483648
        %v1088 = vsel %vm1086, %v1087, %v1085
        %v1089 = vrsqrt.pop %v1081
        %v1090 = vmul.f32 %v1081, %v1089
        %vm1091 = vcmp.eq.f32.partialorder %v1081, inf
        %v1092 = vsel %vm1091, %v1081, %v1090
        %vm1093 = vcmp.eq.f32.partialorder %v1081, 0.0
        %v1094 = vand.u32 %v1081, 2147483648
        %v1095 = vsel %vm1093, %v1094, %v1092
        %v1096 = vmul.f32 %v1088, 0.8333333
        %v1097 = vmul.f32 %v1095, 0.8333333
        %v1098 = vsub.f32 1.0, %v1096
        %v1099 = vsub.f32 1.0, %v1097
        %v1100 = vmax.f32 %v1098, 0.0
        %v1101 = vmax.f32 %v1099, 0.0
        %v1102 = vld [vmem:[%s224 + $0x6] sm:$0x1]
        %v1103 = vlaneseq
        %v1104 = vshrl.u32 %v1103, 7
        %v1105 = vsub.s32 0, %v1104
        %v1106 = vrot.slane %v1102, %v1105
        %v1107 = vmul.f32 %v1100, %v1106
        %v1108 = vmul.f32 %v1101, %v1106
        %v1109 = vadd.f32 %v984, %v1107
        %v1110 = vadd.f32 %v985, %v1108
        %v1111 = vld [vmem:[%s354 + $0x6] sm:$0x1]
        %v1112 = vlaneseq
        %v1113 = vshrl.u32 %v1112, 7
        %v1114 = vsub.s32 0, %v1113
        %v1115 = vrot.slane %v1111, %v1114
        %v1116 = vmul.f32 %v1100, %v1115
        %v1117 = vmul.f32 %v1101, %v1115
        %v1118 = vadd.f32 %v993, %v1116
        %v1119 = vadd.f32 %v994, %v1117
        %v1120 = vld [vmem:[%s364 + $0x6] sm:$0x1]
        %v1121 = vlaneseq
        %v1122 = vshrl.u32 %v1121, 7
        %v1123 = vsub.s32 0, %v1122
        %v1124 = vrot.slane %v1120, %v1123
        %v1125 = vmul.f32 %v1100, %v1124
        %v1126 = vmul.f32 %v1101, %v1124
        %v1127 = vadd.f32 %v1002, %v1125
        %v1128 = vadd.f32 %v1003, %v1126
        %v1129 = vld [vmem:[%s374 + $0x6] sm:$0x1]
        %v1130 = vlaneseq
        %v1131 = vshrl.u32 %v1130, 7
        %v1132 = vsub.s32 0, %v1131
        %v1133 = vrot.slane %v1129, %v1132
        %v1134 = vmul.f32 %v1100, %v1133
        %v1135 = vmul.f32 %v1101, %v1133
        %v1136 = vadd.f32 %v1011, %v1134
        %v1137 = vadd.f32 %v1012, %v1135
        %v1138 = vld [vmem:[%s384 + $0x6] sm:$0x1]
        %v1139 = vlaneseq
        %v1140 = vshrl.u32 %v1139, 7
        %v1141 = vsub.s32 0, %v1140
        %v1142 = vrot.slane %v1138, %v1141
        %v1143 = vmul.f32 %v1100, %v1142
        %v1144 = vmul.f32 %v1101, %v1142
        %v1145 = vadd.f32 %v1020, %v1143
        %v1146 = vadd.f32 %v1021, %v1144
        %v1147 = vld [vmem:[%s394 + $0x6] sm:$0x1]
        %v1148 = vlaneseq
        %v1149 = vshrl.u32 %v1148, 7
        %v1150 = vsub.s32 0, %v1149
        %v1151 = vrot.slane %v1147, %v1150
        %v1152 = vmul.f32 %v1100, %v1151
        %v1153 = vmul.f32 %v1101, %v1151
        %v1154 = vadd.f32 %v1029, %v1152
        %v1155 = vadd.f32 %v1030, %v1153
        %v1156 = vld [vmem:[%s404 + $0x6] sm:$0x1]
        %v1157 = vlaneseq
        %v1158 = vshrl.u32 %v1157, 7
        %v1159 = vsub.s32 0, %v1158
        %v1160 = vrot.slane %v1156, %v1159
        %v1161 = vmul.f32 %v1100, %v1160
        %v1162 = vmul.f32 %v1101, %v1160
        %v1163 = vadd.f32 %v1038, %v1161
        %v1164 = vadd.f32 %v1039, %v1162
        %v1165 = vld [vmem:[%s414 + $0x6] sm:$0x1]
        %v1166 = vlaneseq
        %v1167 = vshrl.u32 %v1166, 7
        %v1168 = vsub.s32 0, %v1167
        %v1169 = vrot.slane %v1165, %v1168
        %v1170 = vmul.f32 %v1100, %v1169
        %v1171 = vmul.f32 %v1101, %v1169
        %v1172 = vadd.f32 %v1047, %v1170
        %v1173 = vadd.f32 %v1048, %v1171
        %v1174 = vld [vmem:[%s215 + $0x7] sm:$0x1]
        %v1175 = vlaneseq
        %v1176 = vshrl.u32 %v1175, 7
        %v1177 = vsub.s32 0, %v1176
        %v1178 = vrot.slane %v1174, %v1177
        %v1179 = vsub.f32 %v1178, %v264
        %v1180 = vsub.f32 %v1178, %v269
        %v1181 = vmul.f32 %v1179, %v1179
        %v1182 = vmul.f32 %v1180, %v1180
        %v1183 = vadd.f32 %v1181, 0.0
        %v1184 = vadd.f32 %v1182, 0.0
        %v1185 = vld [vmem:[%s281 + $0x7] sm:$0x1]
        %v1186 = vlaneseq
        %v1187 = vshrl.u32 %v1186, 7
        %v1188 = vsub.s32 0, %v1187
        %v1189 = vrot.slane %v1185, %v1188
        %v1190 = vsub.f32 %v1189, %v286
        %v1191 = vsub.f32 %v1189, %v291
        %v1192 = vmul.f32 %v1190, %v1190
        %v1193 = vmul.f32 %v1191, %v1191
        %v1194 = vadd.f32 %v1183, %v1192
        %v1195 = vadd.f32 %v1184, %v1193
        %v1196 = vld [vmem:[%s303 + $0x7] sm:$0x1]
        %v1197 = vlaneseq
        %v1198 = vshrl.u32 %v1197, 7
        %v1199 = vsub.s32 0, %v1198
        %v1200 = vrot.slane %v1196, %v1199
        %v1201 = vsub.f32 %v1200, %v308
        %v1202 = vsub.f32 %v1200, %v313
        %v1203 = vmul.f32 %v1201, %v1201
        %v1204 = vmul.f32 %v1202, %v1202
        %v1205 = vadd.f32 %v1194, %v1203
        %v1206 = vadd.f32 %v1195, %v1204
        %v1207 = vrsqrt.pop %v1205
        %v1208 = vmul.f32 %v1205, %v1207
        %vm1209 = vcmp.eq.f32.partialorder %v1205, inf
        %v1210 = vsel %vm1209, %v1205, %v1208
        %vm1211 = vcmp.eq.f32.partialorder %v1205, 0.0
        %v1212 = vand.u32 %v1205, 2147483648
        %v1213 = vsel %vm1211, %v1212, %v1210
        %v1214 = vrsqrt.pop %v1206
        %v1215 = vmul.f32 %v1206, %v1214
        %vm1216 = vcmp.eq.f32.partialorder %v1206, inf
        %v1217 = vsel %vm1216, %v1206, %v1215
        %vm1218 = vcmp.eq.f32.partialorder %v1206, 0.0
        %v1219 = vand.u32 %v1206, 2147483648
        %v1220 = vsel %vm1218, %v1219, %v1217
        %v1221 = vmul.f32 %v1213, 0.8333333
        %v1222 = vmul.f32 %v1220, 0.8333333
        %v1223 = vsub.f32 1.0, %v1221
        %v1224 = vsub.f32 1.0, %v1222
        %v1225 = vmax.f32 %v1223, 0.0
        %v1226 = vmax.f32 %v1224, 0.0
        %v1227 = vld [vmem:[%s224 + $0x7] sm:$0x1]
        %v1228 = vlaneseq
        %v1229 = vshrl.u32 %v1228, 7
        %v1230 = vsub.s32 0, %v1229
        %v1231 = vrot.slane %v1227, %v1230
        %v1232 = vmul.f32 %v1225, %v1231
        %v1233 = vmul.f32 %v1226, %v1231
        %v1234 = vadd.f32 %v1109, %v1232
        %v1235 = vadd.f32 %v1110, %v1233
        %v1236 = vld [vmem:[%s354 + $0x7] sm:$0x1]
        %v1237 = vlaneseq
        %v1238 = vshrl.u32 %v1237, 7
        %v1239 = vsub.s32 0, %v1238
        %v1240 = vrot.slane %v1236, %v1239
        %v1241 = vmul.f32 %v1225, %v1240
        %v1242 = vmul.f32 %v1226, %v1240
        %v1243 = vadd.f32 %v1118, %v1241
        %v1244 = vadd.f32 %v1119, %v1242
        %v1245 = vld [vmem:[%s364 + $0x7] sm:$0x1]
        %v1246 = vlaneseq
        %v1247 = vshrl.u32 %v1246, 7
        %v1248 = vsub.s32 0, %v1247
        %v1249 = vrot.slane %v1245, %v1248
        %v1250 = vmul.f32 %v1225, %v1249
        %v1251 = vmul.f32 %v1226, %v1249
        %v1252 = vadd.f32 %v1127, %v1250
        %v1253 = vadd.f32 %v1128, %v1251
        %v1254 = vld [vmem:[%s374 + $0x7] sm:$0x1]
        %v1255 = vlaneseq
        %v1256 = vshrl.u32 %v1255, 7
        %v1257 = vsub.s32 0, %v1256
        %v1258 = vrot.slane %v1254, %v1257
        %v1259 = vmul.f32 %v1225, %v1258
        %v1260 = vmul.f32 %v1226, %v1258
        %v1261 = vadd.f32 %v1136, %v1259
        %v1262 = vadd.f32 %v1137, %v1260
        %v1263 = vld [vmem:[%s384 + $0x7] sm:$0x1]
        %v1264 = vlaneseq
        %v1265 = vshrl.u32 %v1264, 7
        %v1266 = vsub.s32 0, %v1265
        %v1267 = vrot.slane %v1263, %v1266
        %v1268 = vmul.f32 %v1225, %v1267
        %v1269 = vmul.f32 %v1226, %v1267
        %v1270 = vadd.f32 %v1145, %v1268
        %v1271 = vadd.f32 %v1146, %v1269
        %v1272 = vld [vmem:[%s394 + $0x7] sm:$0x1]
        %v1273 = vlaneseq
        %v1274 = vshrl.u32 %v1273, 7
        %v1275 = vsub.s32 0, %v1274
        %v1276 = vrot.slane %v1272, %v1275
        %v1277 = vmul.f32 %v1225, %v1276
        %v1278 = vmul.f32 %v1226, %v1276
        %v1279 = vadd.f32 %v1154, %v1277
        %v1280 = vadd.f32 %v1155, %v1278
        %v1281 = vld [vmem:[%s404 + $0x7] sm:$0x1]
        %v1282 = vlaneseq
        %v1283 = vshrl.u32 %v1282, 7
        %v1284 = vsub.s32 0, %v1283
        %v1285 = vrot.slane %v1281, %v1284
        %v1286 = vmul.f32 %v1225, %v1285
        %v1287 = vmul.f32 %v1226, %v1285
        %v1288 = vadd.f32 %v1163, %v1286
        %v1289 = vadd.f32 %v1164, %v1287
        %v1290 = vld [vmem:[%s414 + $0x7] sm:$0x1]
        %v1291 = vlaneseq
        %v1292 = vshrl.u32 %v1291, 7
        %v1293 = vsub.s32 0, %v1292
        %v1294 = vrot.slane %v1290, %v1293
        %v1295 = vmul.f32 %v1225, %v1294
        %v1296 = vmul.f32 %v1226, %v1294
        %v1297 = vadd.f32 %v1172, %v1295
        %v1298 = vadd.f32 %v1173, %v1296
        %v1299 = vld [vmem:[%s3] sm:$0xff]
        %v1300 = vld [vmem:[%s3 + $0x8] sm:$0xff]
        %1301 = vmatprep.subr.mxu0 0.0
        %1302 = vmatpush1.msra.mxu0 %v1298
        %1303 = vmatprep.subr.mxu0 0.0
        %1304 = vmatpush1.msra.mxu0 %v1297
        %1305 = vmatprep.subr.mxu0 0.0
        %1306 = vmatpush1.msra.mxu0 %v1289
        %1307 = vmatprep.subr.mxu0 0.0
        %1308 = vmatpush1.msra.mxu0 %v1288
        %1309 = vmatprep.subr.mxu0 0.0
        %1310 = vmatpush1.msra.mxu0 %v1280
        %1311 = vmatprep.subr.mxu0 0.0
        %1312 = vmatpush1.msra.mxu0 %v1279
        %1313 = vmatprep.subr.mxu0 0.0
        %1314 = vmatpush1.msra.mxu0 %v1271
        %1315 = vmatprep.subr.mxu0 0.0
        %1316 = vmatpush1.msra.mxu0 %v1270
        %1317 = vmatprep.subr.mxu0 0.0
        %1318 = vmatpush1.msra.mxu0 %v1262
        %1319 = vmatprep.subr.mxu0 0.0
        %1320 = vmatpush1.msra.mxu0 %v1261
        %1321 = vmatprep.subr.mxu0 0.0
        %1322 = vmatpush1.msra.mxu0 %v1253
        %1323 = vmatprep.subr.mxu0 0.0
        %1324 = vmatpush1.msra.mxu0 %v1252
        %1325 = vmatprep.subr.mxu0 0.0
        %1326 = vmatpush1.msra.mxu0 %v1244
        %1327 = vmatprep.subr.mxu0 0.0
        %1328 = vmatpush1.msra.mxu0 %v1243
        %1329 = vmatprep.subr.mxu0 0.0
        %1330 = vmatpush1.msra.mxu0 %v1235
        %1331 = vmatprep.subr.mxu0 0.0
        %1332 = vmatpush1.msra.mxu0 %v1234
        %1333 = vmatprep.subr.mxu0 0.0
        %1334 = vmatpush2.msra.mxu0 0.0
        %1335 = vmatprep.subr.mxu0 0.0
        %1336 = vmatpush2.msra.mxu0 0.0
        %1337 = vmatprep.subr.mxu0 0.0
        %1338 = vmatpush2.msra.mxu0 0.0
        %1339 = vmatprep.subr.mxu0 0.0
        %1340 = vmatpush2.msra.mxu0 0.0
        %1341 = vmatprep.subr.mxu0 0.0
        %1342 = vmatpush2.msra.mxu0 0.0
        %1343 = vmatprep.subr.mxu0 0.0
        %1344 = vmatpush2.msra.mxu0 0.0
        %1345 = vmatprep.subr.mxu0 0.0
        %1346 = vmatpush2.msra.mxu0 0.0
        %1347 = vmatprep.subr.mxu0 0.0
        %1348 = vmatpush2.msra.mxu0 0.0
        %1349 = vmatprep.subr.mxu0 0.0
        %1350 = vmatpush2.msra.mxu0 0.0
        %1351 = vmatprep.subr.mxu0 0.0
        %1352 = vmatpush2.msra.mxu0 0.0
        %1353 = vmatprep.subr.mxu0 0.0
        %1354 = vmatpush2.msra.mxu0 0.0
        %1355 = vmatprep.subr.mxu0 0.0
        %1356 = vmatpush2.msra.mxu0 0.0
        %1357 = vmatprep.subr.mxu0 0.0
        %1358 = vmatpush2.msra.mxu0 0.0
        %1359 = vmatprep.subr.mxu0 0.0
        %1360 = vmatpush2.msra.mxu0 0.0
        %1361 = vmatprep.subr.mxu0 0.0
        %1362 = vmatpush2.msra.mxu0 0.0
        %1363 = vmatprep.subr.mxu0 0.0
        %1364 = vmatpush2.msra.mxu0 0.0
        %1365 = vmatprep.mubr.f32.mxu0 0.0
        %1366 = vmatmul.mubr.f32.gmra.mxu0 %v1299
        %v1367 = vpop.f32.mrf.mxu0
        %v1368 = vadd.f32 0.0, %v1367
        %v1369 = vpop.f32.mrf.mxu0
        %1370 = vmatprep.mubr.f32.mxu0 0.0
        %1371 = vmatmul.mubr.f32.gmra.mxu0 %v1300
        %v1372 = vpop.f32.mrf.mxu0
        %v1373 = vadd.f32 0.0, %v1372
        %v1374 = vpop.f32.mrf.mxu0
        %1375 = vdwg.mxu0
        %1376 = vst [vmem:[%s253] sm:$0xff] %v1368
        %1377 = vst [vmem:[%s253 + $0x8] sm:$0xff] %v1373
        %s1378 = sand.u32 %s126, 1
        %s1379 = scalar_lea.sflag [#allocation4], %s1378
        %s1380 = sand.u32 %s126, 1
        %s1381 = smul.addr %s1380, 16
        %s1382 = scalar_lea.vmem [#allocation7], %s1381
        // Predicated region
        $region45: #{tpu_custom_call.1} parent=35 // pred_check
          %p1383 = pneg %p136
        $region46: #{tpu_custom_call.1} parent=35 // pred_check_branch
          %1385 = sbr.rel (%p1383) target = $region48
        $region47: #{tpu_custom_call.1} parent=35 // pred_region
          %s1387 = ssub.s32 256, 256
          %1388 = vsyncadd %s1379, %s1387
          %s1389 = smul.addr %s24, 128
          %s1390 = scalar_lea.hbm %s4, %s1389
          %s1391 = sshll.u32 %s1382, 4
          %s1392 = int_to_ptr.vmem [resolvable:$true] %s1391
          %1397 = dma.vmem_to_hbm [thread:$0]  %s1392, 256, %s1390, %s1379, 128, 384, 8
        $region48: #{tpu_custom_call.1} parent=35 // pred_fallthru
          _
      $region36: #{tpu_custom_call.1} parent=5 // pred_fallthru
        _
      %p1398 = scmp.le.s32.totalorder 2, %s19
      // Predicated region
      $region49: #{tpu_custom_call.1} parent=5 // pred_check
        %p1399 = pneg %p1398
      $region50: #{tpu_custom_call.1} parent=5 // pred_check_branch
        %1401 = sbr.rel (%p1399) target = $region52
      $region51: #{tpu_custom_call.1} parent=5 // pred_region
        %s1402 = ssub.s32 %s19, 2
        // Predicated region
        $region53: #{tpu_custom_call.1} parent=51 // pred_check
          %p1403 = pneg %p142
        $region54: #{tpu_custom_call.1} parent=51 // pred_check_branch
          %1405 = sbr.rel (%p1403) target = $region56
        $region55: #{tpu_custom_call.1} parent=51 // pred_region
          %s1406 = sand.u32 %s127, 1
          %s1407 = scalar_lea.sflag [#allocation4], %s1406
          %s1408 = sand.u32 %s127, 1
          %s1409 = smul.addr %s1408, 16
          %s1410 = scalar_lea.vmem [#allocation7], %s1409
          %1411 = dma.done %s1407, 256
        $region56: #{tpu_custom_call.1} parent=51 // pred_fallthru
          _
      $region52: #{tpu_custom_call.1} parent=5 // pred_fallthru
        _
    $region6: #{tpu_custom_call.1} parent=1 // loop_footer
      %s23 = sadd.s32 1, %s19
    $region7: #{tpu_custom_call.1} parent=1 // loop_footer_branch
      %18 = sbr.rel target = $region3
    $region8: #{tpu_custom_call.1} parent=1 // loop_exit
      _
    %1412 = vsyncpa [#allocation3], 1
    %s1413 = scalar_lea.sflag [#allocation3], 1
    %1414 = vsyncpa %s1413, 1
    %1415 = vsyncpa [#allocation6], 1
    %s1416 = scalar_lea.sflag [#allocation6], 1
    %1417 = vsyncpa %s1416, 1
    %1418 = vsyncpa [#allocation4], 1
    %s1419 = scalar_lea.sflag [#allocation4], 1
    %1420 = vsyncpa %s1419, 1

</llo_original>
